<compile_context>
chip_gen: v7x
topology: tpu7x:2x2x1
jax: 0.10.0
libtpu: 0.0.40
codegen_flags: <defaults>
</compile_context>

<pallas_src>
import jax
import jax.numpy as jnp
from jax.experimental import pallas as pl
from jax.experimental.pallas import tpu as pltpu


def mlp_kernel(x_ref, w_in_ref, b1_ref, w_out_ref, b2_ref, o_ref):
    # x_ref:     (G, batch, d_model)   current group of instances
    # w_in_ref:  (G, d_model, d_mlp)
    # b1_ref:    (G, 1, d_mlp)
    # w_out_ref: (G, d_mlp, d_model)
    # b2_ref:    (G, 1, d_model)
    # o_ref:     (G, batch, d_model)
    g_count = x_ref.shape[0]
    # Static unroll over the group: static leading-dim indexing is a zero-cost view;
    # the G instances are independent so the scheduler can overlap their MXU work.
    for g in range(g_count):
        x = x_ref[g]                                          # (batch, d_model)
        mid_pre = jnp.dot(x, w_in_ref[g],
                          preferred_element_type=jnp.float32)
        mid_pre = mid_pre + b1_ref[g]                         # broadcast (1, d_mlp)
        mid = jnp.maximum(mid_pre, 0.0)                       # act_fn = ReLU, in f32
        out = jnp.dot(mid.astype(w_out_ref.dtype), w_out_ref[g],
                      preferred_element_type=jnp.float32)
        out = out + b2_ref[g]                                 # broadcast (1, d_model)
        o_ref[g] = out.astype(o_ref.dtype)


def _choose_group_size(n_inst, batch, d_model, d_mlp, w_bytes, x_bytes,
                       target_weight_bytes=2 << 20, vmem_budget=16 << 20):
    """Pick how many instances to process per grid step.

    Constraints / preferences:
      * group size divides n_inst
      * double-buffered working set (weights + biases + x/out blocks) <= vmem_budget
      * keep >= 2 grid steps when possible (v7x has 2 TensorCores per chip)
      * smallest group whose per-step weight DMA reaches ~target_weight_bytes,
        otherwise the largest group that still fits.
    """
    per_inst_w = (2 * d_model * d_mlp + d_mlp + d_model) * w_bytes
    per_inst_io = 2 * batch * d_model * x_bytes               # x block + out block
    divisors = [g for g in range(1, n_inst + 1) if n_inst % g == 0]
    fitting = [g for g in divisors
               if 2 * g * (per_inst_w + per_inst_io) <= vmem_budget]
    if not fitting:
        return 1
    pref = [g for g in fitting if n_inst // g >= 2] or fitting
    for g in pref:
        if g * per_inst_w >= target_weight_bytes:
            return g
    return pref[-1]


def mlp_forward(x, w_in, b1, w_out, b2, *, group_size=None, interpret=False):
    """x: [batch, n_instances, d_model] -> [batch, n_instances, d_model]."""
    batch, n_inst, d_model = x.shape
    d_mlp = w_in.shape[-1]
    assert w_in.shape == (n_inst, d_model, d_mlp), w_in.shape
    assert w_out.shape == (n_inst, d_mlp, d_model), w_out.shape

    # The module allows bias-less layers; that is equivalent to a zero bias.
    if b1 is None:
        b1 = jnp.zeros((n_inst, d_mlp), dtype=w_in.dtype)
    if b2 is None:
        b2 = jnp.zeros((n_inst, d_model), dtype=w_out.dtype)

    w_bytes = jnp.dtype(w_in.dtype).itemsize
    x_bytes = jnp.dtype(x.dtype).itemsize
    if group_size is None:
        group_size = _choose_group_size(n_inst, batch, d_model, d_mlp,
                                        w_bytes, x_bytes)
    assert n_inst % group_size == 0, (n_inst, group_size)
    n_groups = n_inst // group_size

    # Instance-major layout inside the kernel so each grid step's DMAs are
    # contiguous slabs.  (Keeping caller-side state instance-major would remove
    # these two small HBM round-trips; negligible at small batch.)
    x_k = jnp.transpose(x, (1, 0, 2))                         # (n_inst, batch, d_model)
    b1_k = b1.reshape(n_inst, 1, d_mlp)
    b2_k = b2.reshape(n_inst, 1, d_model)

    flops = 4 * batch * d_model * d_mlp * n_inst              # two matmuls, 2 flops/MAC
    bytes_accessed = (
        n_inst * (2 * d_model * d_mlp + d_mlp + d_model) * w_bytes
        + 2 * batch * n_inst * d_model * x_bytes)

    out_k = pl.pallas_call(
        mlp_kernel,
        out_shape=jax.ShapeDtypeStruct((n_inst, batch, d_model), x.dtype),
        grid_spec=pltpu.PrefetchScalarGridSpec(
            num_scalar_prefetch=0,
            grid=(n_groups,),
            in_specs=[
                pl.BlockSpec((group_size, batch, d_model), lambda i: (i, 0, 0)),
                pl.BlockSpec((group_size, d_model, d_mlp), lambda i: (i, 0, 0)),
                pl.BlockSpec((group_size, 1, d_mlp), lambda i: (i, 0, 0)),
                pl.BlockSpec((group_size, d_mlp, d_model), lambda i: (i, 0, 0)),
                pl.BlockSpec((group_size, 1, d_model), lambda i: (i, 0, 0)),
            ],
            out_specs=pl.BlockSpec((group_size, batch, d_model),
                                   lambda i: (i, 0, 0)),
        ),
        compiler_params=pltpu.CompilerParams(
            dimension_semantics=("parallel",),
            vmem_limit_bytes=32 * 1024 * 1024),
        cost_estimate=pl.CostEstimate(flops=flops, transcendentals=0,
                                      bytes_accessed=bytes_accessed),
        interpret=interpret,
    )(x_k, w_in, b1_k, w_out, b2_k)

    return jnp.transpose(out_k, (1, 0, 2))                    # (batch, n_inst, d_model)


def init_params(key, n_instances, d_model, d_mlp, init_scale=1.0,
                dtype=jnp.float32):
    """Param init mirroring the module's shapes.

    Weights: kaiming-uniform style, bound = init_scale * sqrt(6 / fan_in).
    Biases:  zeros (as in the PyTorch module); a missing bias is equivalent to zeros.
    """
    k_in, k_out = jax.random.split(key)
    bound_in = init_scale * (6.0 / d_model) ** 0.5
    bound_out = init_scale * (6.0 / d_mlp) ** 0.5
    w_in = jax.random.uniform(k_in, (n_instances, d_model, d_mlp),
                              minval=-bound_in, maxval=bound_in, dtype=dtype)
    w_out = jax.random.uniform(k_out, (n_instances, d_mlp, d_model),
                               minval=-bound_out, maxval=bound_out, dtype=dtype)
    b1 = jnp.zeros((n_instances, d_mlp), dtype)
    b2 = jnp.zeros((n_instances, d_model), dtype)
    return w_in, b1, w_out, b2


if __name__ == "__main__":
    batch, n_instances, d_model, d_mlp = 8, 8, 128, 256
    key = jax.random.PRNGKey(0)
    kx, kp, kb1, kb2 = jax.random.split(key, 4)

    x = jax.random.normal(kx, (batch, n_instances, d_model), dtype=jnp.float32)
    w_in, b1, w_out, b2 = init_params(kp, n_instances, d_model, d_mlp,
                                      init_scale=1.0)
    # Non-zero biases to exercise the bias path (the module inits them to zero).
    b1 = 0.1 * jax.random.normal(kb1, (n_instances, d_mlp), dtype=jnp.float32)
    b2 = 0.1 * jax.random.normal(kb2, (n_instances, d_model), dtype=jnp.float32)

    out = mlp_forward(x, w_in, b1, w_out, b2)
    out = jax.block_until_ready(out)

    # Pure-JAX reference (same semantics as the PyTorch forward).
    mid = jnp.maximum(jnp.einsum('bid,ide->bie', x, w_in) + b1[None], 0.0)
    ref = jnp.einsum('bie,ied->bid', mid, w_out) + b2[None]

    assert out.shape == (batch, n_instances, d_model), out.shape
    err = float(jnp.max(jnp.abs(out - ref)))
    assert jnp.allclose(out, ref, atol=1e-4, rtol=1e-4), err
    print("KERNEL_OK")
</pallas_src>

<mosaic_0001>
module attributes {stable_mosaic.version = 11 : i64} {
  func.func @mlp_kernel(%arg0: i32, %arg1: memref<4x8x128xf32, #tpu.memory_space<vmem>>, %arg2: memref<4x128x256xf32, #tpu.memory_space<vmem>>, %arg3: memref<4x1x256xf32, #tpu.memory_space<vmem>>, %arg4: memref<4x256x128xf32, #tpu.memory_space<vmem>>, %arg5: memref<4x1x128xf32, #tpu.memory_space<vmem>>, %arg6: memref<4x8x128xf32, #tpu.memory_space<vmem>>) attributes {dimension_semantics = [#tpu.dimension_semantics<parallel>], iteration_bounds = array<i64: 2>, scalar_prefetch = 0 : i64, scratch_operands = 0 : i64, tpu.core_type = #tpu.core_type<tc>, window_params = [{transform_indices = @transform_0, window_bounds = array<i64: 4, 8, 128>}, {transform_indices = @transform_1, window_bounds = array<i64: 4, 128, 256>}, {transform_indices = @transform_2, window_bounds = array<i64: 4, 1, 256>}, {transform_indices = @transform_3, window_bounds = array<i64: 4, 256, 128>}, {transform_indices = @transform_4, window_bounds = array<i64: 4, 1, 128>}, {transform_indices = @transform_5, window_bounds = array<i64: 4, 8, 128>}]} {
    %c0 = arith.constant 0 : index
    %c0_0 = arith.constant 0 : index
    %c0_1 = arith.constant 0 : index
    %0 = vector.load %arg1[%c0, %c0_0, %c0_1] : memref<4x8x128xf32, #tpu.memory_space<vmem>>, vector<1x8x128xf32>
    %1 = vector.shape_cast %0 : vector<1x8x128xf32> to vector<8x128xf32>
    %c0_2 = arith.constant 0 : index
    %c0_3 = arith.constant 0 : index
    %c0_4 = arith.constant 0 : index
    %2 = vector.load %arg2[%c0_2, %c0_3, %c0_4] : memref<4x128x256xf32, #tpu.memory_space<vmem>>, vector<1x128x256xf32>
    %3 = vector.shape_cast %2 : vector<1x128x256xf32> to vector<128x256xf32>
    %cst = arith.constant dense<0.000000e+00> : vector<8x256xf32>
    %4 = tpu.matmul %1, %3, %cst {dimension_numbers = #tpu.dot_dimension_numbers<[1], [0], [0], [1], [0, 0, 1, 1], [], []>} : vector<8x128xf32>, vector<128x256xf32>, vector<8x256xf32> -> vector<8x256xf32>
    %c0_5 = arith.constant 0 : index
    %c0_6 = arith.constant 0 : index
    %c0_7 = arith.constant 0 : index
    %5 = vector.load %arg3[%c0_5, %c0_6, %c0_7] : memref<4x1x256xf32, #tpu.memory_space<vmem>>, vector<1x1x256xf32>
    %6 = vector.shape_cast %5 : vector<1x1x256xf32> to vector<1x256xf32>
    %7 = vector.broadcast %6 : vector<1x256xf32> to vector<8x256xf32>
    %8 = arith.addf %4, %7 : vector<8x256xf32>
    %cst_8 = arith.constant 0.000000e+00 : f32
    %9 = vector.broadcast %cst_8 : f32 to vector<8x256xf32>
    %10 = arith.maximumf %8, %9 : vector<8x256xf32>
    %c0_9 = arith.constant 0 : index
    %c0_10 = arith.constant 0 : index
    %c0_11 = arith.constant 0 : index
    %11 = vector.load %arg4[%c0_9, %c0_10, %c0_11] : memref<4x256x128xf32, #tpu.memory_space<vmem>>, vector<1x256x128xf32>
    %12 = vector.shape_cast %11 : vector<1x256x128xf32> to vector<256x128xf32>
    %cst_12 = arith.constant dense<0.000000e+00> : vector<8x128xf32>
    %13 = tpu.matmul %10, %12, %cst_12 {dimension_numbers = #tpu.dot_dimension_numbers<[1], [0], [0], [1], [0, 0, 1, 1], [], []>} : vector<8x256xf32>, vector<256x128xf32>, vector<8x128xf32> -> vector<8x128xf32>
    %c0_13 = arith.constant 0 : index
    %c0_14 = arith.constant 0 : index
    %c0_15 = arith.constant 0 : index
    %14 = vector.load %arg5[%c0_13, %c0_14, %c0_15] : memref<4x1x128xf32, #tpu.memory_space<vmem>>, vector<1x1x128xf32>
    %15 = vector.shape_cast %14 : vector<1x1x128xf32> to vector<1x128xf32>
    %16 = vector.broadcast %15 : vector<1x128xf32> to vector<8x128xf32>
    %17 = arith.addf %13, %16 : vector<8x128xf32>
    %c0_16 = arith.constant 0 : index
    %c0_17 = arith.constant 0 : index
    %c0_18 = arith.constant 0 : index
    %18 = vector.load %arg6[%c0_16, %c0_17, %c0_18] : memref<4x8x128xf32, #tpu.memory_space<vmem>>, vector<1x8x128xf32>
    %19 = vector.shape_cast %18 : vector<1x8x128xf32> to vector<8x128xf32>
    %20 = vector.shape_cast %17 : vector<8x128xf32> to vector<1x8x128xf32>
    tpu.vector_store %arg6[%c0_16, %c0_17, %c0_18], %20 {strides = array<i32>} : memref<4x8x128xf32, #tpu.memory_space<vmem>>, vector<1x8x128xf32>,
    %c1 = arith.constant 1 : index
    %c0_19 = arith.constant 0 : index
    %c0_20 = arith.constant 0 : index
    %21 = vector.load %arg1[%c1, %c0_19, %c0_20] : memref<4x8x128xf32, #tpu.memory_space<vmem>>, vector<1x8x128xf32>
    %22 = vector.shape_cast %21 : vector<1x8x128xf32> to vector<8x128xf32>
    %c1_21 = arith.constant 1 : index
    %c0_22 = arith.constant 0 : index
    %c0_23 = arith.constant 0 : index
    %23 = vector.load %arg2[%c1_21, %c0_22, %c0_23] : memref<4x128x256xf32, #tpu.memory_space<vmem>>, vector<1x128x256xf32>
    %24 = vector.shape_cast %23 : vector<1x128x256xf32> to vector<128x256xf32>
    %cst_24 = arith.constant dense<0.000000e+00> : vector<8x256xf32>
    %25 = tpu.matmul %22, %24, %cst_24 {dimension_numbers = #tpu.dot_dimension_numbers<[1], [0], [0], [1], [0, 0, 1, 1], [], []>} : vector<8x128xf32>, vector<128x256xf32>, vector<8x256xf32> -> vector<8x256xf32>
    %c1_25 = arith.constant 1 : index
    %c0_26 = arith.constant 0 : index
    %c0_27 = arith.constant 0 : index
    %26 = vector.load %arg3[%c1_25, %c0_26, %c0_27] : memref<4x1x256xf32, #tpu.memory_space<vmem>>, vector<1x1x256xf32>
    %27 = vector.shape_cast %26 : vector<1x1x256xf32> to vector<1x256xf32>
    %28 = vector.broadcast %27 : vector<1x256xf32> to vector<8x256xf32>
    %29 = arith.addf %25, %28 : vector<8x256xf32>
    %cst_28 = arith.constant 0.000000e+00 : f32
    %30 = vector.broadcast %cst_28 : f32 to vector<8x256xf32>
    %31 = arith.maximumf %29, %30 : vector<8x256xf32>
    %c1_29 = arith.constant 1 : index
    %c0_30 = arith.constant 0 : index
    %c0_31 = arith.constant 0 : index
    %32 = vector.load %arg4[%c1_29, %c0_30, %c0_31] : memref<4x256x128xf32, #tpu.memory_space<vmem>>, vector<1x256x128xf32>
    %33 = vector.shape_cast %32 : vector<1x256x128xf32> to vector<256x128xf32>
    %cst_32 = arith.constant dense<0.000000e+00> : vector<8x128xf32>
    %34 = tpu.matmul %31, %33, %cst_32 {dimension_numbers = #tpu.dot_dimension_numbers<[1], [0], [0], [1], [0, 0, 1, 1], [], []>} : vector<8x256xf32>, vector<256x128xf32>, vector<8x128xf32> -> vector<8x128xf32>
    %c1_33 = arith.constant 1 : index
    %c0_34 = arith.constant 0 : index
    %c0_35 = arith.constant 0 : index
    %35 = vector.load %arg5[%c1_33, %c0_34, %c0_35] : memref<4x1x128xf32, #tpu.memory_space<vmem>>, vector<1x1x128xf32>
    %36 = vector.shape_cast %35 : vector<1x1x128xf32> to vector<1x128xf32>
    %37 = vector.broadcast %36 : vector<1x128xf32> to vector<8x128xf32>
    %38 = arith.addf %34, %37 : vector<8x128xf32>
    %c1_36 = arith.constant 1 : index
    %c0_37 = arith.constant 0 : index
    %c0_38 = arith.constant 0 : index
    %39 = vector.load %arg6[%c1_36, %c0_37, %c0_38] : memref<4x8x128xf32, #tpu.memory_space<vmem>>, vector<1x8x128xf32>
    %40 = vector.shape_cast %39 : vector<1x8x128xf32> to vector<8x128xf32>
    %41 = vector.shape_cast %38 : vector<8x128xf32> to vector<1x8x128xf32>
    tpu.vector_store %arg6[%c1_36, %c0_37, %c0_38], %41 {strides = array<i32>} : memref<4x8x128xf32, #tpu.memory_space<vmem>>, vector<1x8x128xf32>,
    %c2 = arith.constant 2 : index
    %c0_39 = arith.constant 0 : index
    %c0_40 = arith.constant 0 : index
    %42 = vector.load %arg1[%c2, %c0_39, %c0_40] : memref<4x8x128xf32, #tpu.memory_space<vmem>>, vector<1x8x128xf32>
    %43 = vector.shape_cast %42 : vector<1x8x128xf32> to vector<8x128xf32>
    %c2_41 = arith.constant 2 : index
    %c0_42 = arith.constant 0 : index
    %c0_43 = arith.constant 0 : index
    %44 = vector.load %arg2[%c2_41, %c0_42, %c0_43] : memref<4x128x256xf32, #tpu.memory_space<vmem>>, vector<1x128x256xf32>
    %45 = vector.shape_cast %44 : vector<1x128x256xf32> to vector<128x256xf32>
    %cst_44 = arith.constant dense<0.000000e+00> : vector<8x256xf32>
    %46 = tpu.matmul %43, %45, %cst_44 {dimension_numbers = #tpu.dot_dimension_numbers<[1], [0], [0], [1], [0, 0, 1, 1], [], []>} : vector<8x128xf32>, vector<128x256xf32>, vector<8x256xf32> -> vector<8x256xf32>
    %c2_45 = arith.constant 2 : index
    %c0_46 = arith.constant 0 : index
    %c0_47 = arith.constant 0 : index
    %47 = vector.load %arg3[%c2_45, %c0_46, %c0_47] : memref<4x1x256xf32, #tpu.memory_space<vmem>>, vector<1x1x256xf32>
    %48 = vector.shape_cast %47 : vector<1x1x256xf32> to vector<1x256xf32>
    %49 = vector.broadcast %48 : vector<1x256xf32> to vector<8x256xf32>
    %50 = arith.addf %46, %49 : vector<8x256xf32>
    %cst_48 = arith.constant 0.000000e+00 : f32
    %51 = vector.broadcast %cst_48 : f32 to vector<8x256xf32>
    %52 = arith.maximumf %50, %51 : vector<8x256xf32>
    %c2_49 = arith.constant 2 : index
    %c0_50 = arith.constant 0 : index
    %c0_51 = arith.constant 0 : index
    %53 = vector.load %arg4[%c2_49, %c0_50, %c0_51] : memref<4x256x128xf32, #tpu.memory_space<vmem>>, vector<1x256x128xf32>
    %54 = vector.shape_cast %53 : vector<1x256x128xf32> to vector<256x128xf32>
    %cst_52 = arith.constant dense<0.000000e+00> : vector<8x128xf32>
    %55 = tpu.matmul %52, %54, %cst_52 {dimension_numbers = #tpu.dot_dimension_numbers<[1], [0], [0], [1], [0, 0, 1, 1], [], []>} : vector<8x256xf32>, vector<256x128xf32>, vector<8x128xf32> -> vector<8x128xf32>
    %c2_53 = arith.constant 2 : index
    %c0_54 = arith.constant 0 : index
    %c0_55 = arith.constant 0 : index
    %56 = vector.load %arg5[%c2_53, %c0_54, %c0_55] : memref<4x1x128xf32, #tpu.memory_space<vmem>>, vector<1x1x128xf32>
    %57 = vector.shape_cast %56 : vector<1x1x128xf32> to vector<1x128xf32>
    %58 = vector.broadcast %57 : vector<1x128xf32> to vector<8x128xf32>
    %59 = arith.addf %55, %58 : vector<8x128xf32>
    %c2_56 = arith.constant 2 : index
    %c0_57 = arith.constant 0 : index
    %c0_58 = arith.constant 0 : index
    %60 = vector.load %arg6[%c2_56, %c0_57, %c0_58] : memref<4x8x128xf32, #tpu.memory_space<vmem>>, vector<1x8x128xf32>
    %61 = vector.shape_cast %60 : vector<1x8x128xf32> to vector<8x128xf32>
    %62 = vector.shape_cast %59 : vector<8x128xf32> to vector<1x8x128xf32>
    tpu.vector_store %arg6[%c2_56, %c0_57, %c0_58], %62 {strides = array<i32>} : memref<4x8x128xf32, #tpu.memory_space<vmem>>, vector<1x8x128xf32>,
    %c3 = arith.constant 3 : index
    %c0_59 = arith.constant 0 : index
    %c0_60 = arith.constant 0 : index
    %63 = vector.load %arg1[%c3, %c0_59, %c0_60] : memref<4x8x128xf32, #tpu.memory_space<vmem>>, vector<1x8x128xf32>
    %64 = vector.shape_cast %63 : vector<1x8x128xf32> to vector<8x128xf32>
    %c3_61 = arith.constant 3 : index
    %c0_62 = arith.constant 0 : index
    %c0_63 = arith.constant 0 : index
    %65 = vector.load %arg2[%c3_61, %c0_62, %c0_63] : memref<4x128x256xf32, #tpu.memory_space<vmem>>, vector<1x128x256xf32>
    %66 = vector.shape_cast %65 : vector<1x128x256xf32> to vector<128x256xf32>
    %cst_64 = arith.constant dense<0.000000e+00> : vector<8x256xf32>
    %67 = tpu.matmul %64, %66, %cst_64 {dimension_numbers = #tpu.dot_dimension_numbers<[1], [0], [0], [1], [0, 0, 1, 1], [], []>} : vector<8x128xf32>, vector<128x256xf32>, vector<8x256xf32> -> vector<8x256xf32>
    %c3_65 = arith.constant 3 : index
    %c0_66 = arith.constant 0 : index
    %c0_67 = arith.constant 0 : index
    %68 = vector.load %arg3[%c3_65, %c0_66, %c0_67] : memref<4x1x256xf32, #tpu.memory_space<vmem>>, vector<1x1x256xf32>
    %69 = vector.shape_cast %68 : vector<1x1x256xf32> to vector<1x256xf32>
    %70 = vector.broadcast %69 : vector<1x256xf32> to vector<8x256xf32>
    %71 = arith.addf %67, %70 : vector<8x256xf32>
    %cst_68 = arith.constant 0.000000e+00 : f32
    %72 = vector.broadcast %cst_68 : f32 to vector<8x256xf32>
    %73 = arith.maximumf %71, %72 : vector<8x256xf32>
    %c3_69 = arith.constant 3 : index
    %c0_70 = arith.constant 0 : index
    %c0_71 = arith.constant 0 : index
    %74 = vector.load %arg4[%c3_69, %c0_70, %c0_71] : memref<4x256x128xf32, #tpu.memory_space<vmem>>, vector<1x256x128xf32>
    %75 = vector.shape_cast %74 : vector<1x256x128xf32> to vector<256x128xf32>
    %cst_72 = arith.constant dense<0.000000e+00> : vector<8x128xf32>
    %76 = tpu.matmul %73, %75, %cst_72 {dimension_numbers = #tpu.dot_dimension_numbers<[1], [0], [0], [1], [0, 0, 1, 1], [], []>} : vector<8x256xf32>, vector<256x128xf32>, vector<8x128xf32> -> vector<8x128xf32>
    %c3_73 = arith.constant 3 : index
    %c0_74 = arith.constant 0 : index
    %c0_75 = arith.constant 0 : index
    %77 = vector.load %arg5[%c3_73, %c0_74, %c0_75] : memref<4x1x128xf32, #tpu.memory_space<vmem>>, vector<1x1x128xf32>
    %78 = vector.shape_cast %77 : vector<1x1x128xf32> to vector<1x128xf32>
    %79 = vector.broadcast %78 : vector<1x128xf32> to vector<8x128xf32>
    %80 = arith.addf %76, %79 : vector<8x128xf32>
    %c3_76 = arith.constant 3 : index
    %c0_77 = arith.constant 0 : index
    %c0_78 = arith.constant 0 : index
    %81 = vector.load %arg6[%c3_76, %c0_77, %c0_78] : memref<4x8x128xf32, #tpu.memory_space<vmem>>, vector<1x8x128xf32>
    %82 = vector.shape_cast %81 : vector<1x8x128xf32> to vector<8x128xf32>
    %83 = vector.shape_cast %80 : vector<8x128xf32> to vector<1x8x128xf32>
    tpu.vector_store %arg6[%c3_76, %c0_77, %c0_78], %83 {strides = array<i32>} : memref<4x8x128xf32, #tpu.memory_space<vmem>>, vector<1x8x128xf32>,
    return
  }
  func.func @transform_0(%arg0: i32) -> (i32, i32, i32) {
    %c0_i32 = arith.constant 0 : i32
    %c0_i32_0 = arith.constant 0 : i32
    %c0_i32_1 = arith.constant 0 : i32
    return %arg0, %c0_i32, %c0_i32_0 : i32, i32, i32
  }
  func.func @transform_1(%arg0: i32) -> (i32, i32, i32) {
    %c0_i32 = arith.constant 0 : i32
    %c0_i32_0 = arith.constant 0 : i32
    %c0_i32_1 = arith.constant 0 : i32
    return %arg0, %c0_i32, %c0_i32_0 : i32, i32, i32
  }
  func.func @transform_2(%arg0: i32) -> (i32, i32, i32) {
    %c0_i32 = arith.constant 0 : i32
    %c0_i32_0 = arith.constant 0 : i32
    %c0_i32_1 = arith.constant 0 : i32
    return %arg0, %c0_i32, %c0_i32_0 : i32, i32, i32
  }
  func.func @transform_3(%arg0: i32) -> (i32, i32, i32) {
    %c0_i32 = arith.constant 0 : i32
    %c0_i32_0 = arith.constant 0 : i32
    %c0_i32_1 = arith.constant 0 : i32
    return %arg0, %c0_i32, %c0_i32_0 : i32, i32, i32
  }
  func.func @transform_4(%arg0: i32) -> (i32, i32, i32) {
    %c0_i32 = arith.constant 0 : i32
    %c0_i32_0 = arith.constant 0 : i32
    %c0_i32_1 = arith.constant 0 : i32
    return %arg0, %c0_i32, %c0_i32_0 : i32, i32, i32
  }
  func.func @transform_5(%arg0: i32) -> (i32, i32, i32) {
    %c0_i32 = arith.constant 0 : i32
    %c0_i32_0 = arith.constant 0 : i32
    %c0_i32_1 = arith.constant 0 : i32
    return %arg0, %c0_i32, %c0_i32_0 : i32, i32, i32
  }
}

</mosaic_0001>

<llo_original>
// kernel: tpu_custom_call.1
$region0: #{tpu_custom_call.1}
  #allocation0 [shape = 'u32[]', space=smem, size = 0x4, offset = 0x4, fixed_abs, tag = 'smem constant byte address 0x4 - core index']
  #allocation1 [shape = 'u32[144,128]{1,0:T(1,128)}', space=vmem, size = 0x12000, scoped, tag = 'internal scratch']
  %s0 = inlined_call_operand.hbm [shape: f32[8,8,128], index: 0, kind: input, shape index: {}]
  %s1 = inlined_call_operand.hbm [shape: f32[8,128,256], index: 1, kind: input, shape index: {}]
  %s2 = inlined_call_operand.hbm [shape: f32[8,1,256], index: 2, kind: input, shape index: {}]
  %s3 = inlined_call_operand.hbm [shape: f32[8,256,128], index: 3, kind: input, shape index: {}]
  %s4 = inlined_call_operand.vmem [shape: f32[8,1,128], index: 4, kind: input, shape index: {}]
  %s5 = inlined_call_operand.hbm [shape: f32[8,8,128], index: 5, kind: output, shape index: {}]
  %s6 = sld [smem:[#allocation0]]
  $region69: #{tpu_custom_call.1} parent=0
    _
  %s8 = ssub.s32 1, %s6
  %s9 = scalar_select 0, %s8, %s6
  $region1: #{tpu_custom_call.1} parent=0
    #allocation2 [shape = 'u8[32768]{0}', space=vmem, size = 0x8000, scoped, tag = 'input window, operand 0']
    #allocation3 [shape = 's32[2]{0}', space=sflag, size = 0x8, scoped, tag = 'scoped memory for tpu_custom_call.1']
    #allocation4 [shape = 's32[2]{0}', space=sflag, size = 0x8, scoped, tag = 'scoped memory for tpu_custom_call.1']
    #allocation5 [shape = 'u8[1048576]{0}', space=vmem, size = 0x100000, scoped, tag = 'input window, operand 1']
    #allocation6 [shape = 's32[2]{0}', space=sflag, size = 0x8, scoped, tag = 'scoped memory for tpu_custom_call.1']
    #allocation7 [shape = 'u8[8192]{0}', space=vmem, size = 0x2000, scoped, tag = 'input window, operand 2']
    #allocation8 [shape = 'u8[1048576]{0}', space=vmem, size = 0x100000, scoped, tag = 'input window, operand 3']
    #allocation9 [shape = 's32[2]{0}', space=sflag, size = 0x8, scoped, tag = 'scoped memory for tpu_custom_call.1']
    #allocation10 [shape = 'u8[32768]{0}', space=vmem, size = 0x8000, scoped, tag = 'output window, operand 0']
    %10 = vsyncpa [#allocation3], 0
    %s11 = scalar_lea.sflag [#allocation3], 1
    %12 = vsyncpa %s11, 0
    %13 = vsyncpa [#allocation6], 0
    %s14 = scalar_lea.sflag [#allocation6], 1
    %15 = vsyncpa %s14, 0
    %16 = vsyncpa [#allocation9], 0
    %s17 = scalar_lea.sflag [#allocation9], 1
    %18 = vsyncpa %s17, 0
    %19 = vsyncpa [#allocation4], 0
    %s20 = scalar_lea.sflag [#allocation4], 1
    %21 = vsyncpa %s20, 0
    loop: start=0, step=1, limit=4
    $region2: #{tpu_custom_call.1} parent=1 // loop_pre_header
      _
    $region3: #{tpu_custom_call.1} parent=1 // loop_header
      %s23 = sphi 0, %s27
      %p24 = scmp.ge.s32.totalorder %s23, 4
      %s33 = sphi 0, %s35
      %s36 = sphi 0, %s33
      %s37 = sphi 0, %s36
      %s53 = sphi 0, %s37
      %s59 = sphi 0, %s61
      %s62 = sphi 0, %s59
      %s63 = sphi 0, %s62
      %s79 = sphi 0, %s63
      %s85 = sphi 0, %s87
      %s88 = sphi 0, %s85
      %s89 = sphi 0, %s88
      %s105 = sphi 0, %s89
      %s111 = sphi 0, %s113
      %s114 = sphi 0, %s111
      %s115 = sphi 0, %s114
      %s131 = sphi 0, %s115
      %s137 = sphi 0, %s139
      %s140 = sphi 0, %s137
      %s141 = sphi 0, %s140
      %s157 = sphi 0, %s141
      %s163 = sphi 0, %s165
      %s166 = sphi 0, %s163
      %s167 = sphi 0, %s166
      %s183 = sphi 0, %s167
    $region4: #{tpu_custom_call.1} parent=1 // loop_header_branch
      %26 = sbr.rel (%p24) target = $region8
    $region5: #{tpu_custom_call.1} parent=1 // loop_body
      %s28 = ssub.s32 %s23, 1
      %s29 = ssub.s32 %s23, 2
      %s30 = sadd.s32 %s23, 1
      %s31 = ssub.s32 %s23, %s30
      %p32 = scmp.eq.s32.totalorder %s31, 0
      %s34 = sadd.s32 %s33, 1
      %s35 = scalar_select %p32, %s33, %s34
      %p38 = pneg %p32
      %p39 = scmp.eq.s32.totalorder %s23, 1
      %p40 = por %p38, %p39
      %p41 = scmp.ne.s32.totalorder %s33, %s36
      %p42 = scmp.eq.s32.totalorder %s23, 0
      %p43 = por %p41, %p42
      %p44 = scmp.ne.s32.totalorder %s33, %s36
      %p45 = scmp.eq.s32.totalorder %s28, 1
      %p46 = por %p44, %p45
      %p47 = scmp.ne.s32.totalorder %s36, %s37
      %p48 = scmp.eq.s32.totalorder %s28, 0
      %p49 = por %p47, %p48
      %p50 = scmp.ne.s32.totalorder %s36, %s37
      %p51 = scmp.eq.s32.totalorder %s29, 1
      %p52 = por %p50, %p51
      %p54 = scmp.ne.s32.totalorder %s37, %s53
      %p55 = scmp.eq.s32.totalorder %s29, 0
      %p56 = por %p54, %p55
      %s57 = ssub.s32 %s23, %s30
      %p58 = scmp.eq.s32.totalorder %s57, 0
      %s60 = sadd.s32 %s59, 1
      %s61 = scalar_select %p58, %s59, %s60
      %p64 = pneg %p58
      %p65 = scmp.eq.s32.totalorder %s23, 1
      %p66 = por %p64, %p65
      %p67 = scmp.ne.s32.totalorder %s59, %s62
      %p68 = scmp.eq.s32.totalorder %s23, 0
      %p69 = por %p67, %p68
      %p70 = scmp.ne.s32.totalorder %s59, %s62
      %p71 = scmp.eq.s32.totalorder %s28, 1
      %p72 = por %p70, %p71
      %p73 = scmp.ne.s32.totalorder %s62, %s63
      %p74 = scmp.eq.s32.totalorder %s28, 0
      %p75 = por %p73, %p74
      %p76 = scmp.ne.s32.totalorder %s62, %s63
      %p77 = scmp.eq.s32.totalorder %s29, 1
      %p78 = por %p76, %p77
      %p80 = scmp.ne.s32.totalorder %s63, %s79
      %p81 = scmp.eq.s32.totalorder %s29, 0
      %p82 = por %p80, %p81
      %s83 = ssub.s32 %s23, %s30
      %p84 = scmp.eq.s32.totalorder %s83, 0
      %s86 = sadd.s32 %s85, 1
      %s87 = scalar_select %p84, %s85, %s86
      %p90 = pneg %p84
      %p91 = scmp.eq.s32.totalorder %s23, 1
      %p92 = por %p90, %p91
      %p93 = scmp.ne.s32.totalorder %s85, %s88
      %p94 = scmp.eq.s32.totalorder %s23, 0
      %p95 = por %p93, %p94
      %p96 = scmp.ne.s32.totalorder %s85, %s88
      %p97 = scmp.eq.s32.totalorder %s28, 1
      %p98 = por %p96, %p97
      %p99 = scmp.ne.s32.totalorder %s88, %s89
      %p100 = scmp.eq.s32.totalorder %s28, 0
      %p101 = por %p99, %p100
      %p102 = scmp.ne.s32.totalorder %s88, %s89
      %p103 = scmp.eq.s32.totalorder %s29, 1
      %p104 = por %p102, %p103
      %p106 = scmp.ne.s32.totalorder %s89, %s105
      %p107 = scmp.eq.s32.totalorder %s29, 0
      %p108 = por %p106, %p107
      %s109 = ssub.s32 %s23, %s30
      %p110 = scmp.eq.s32.totalorder %s109, 0
      %s112 = sadd.s32 %s111, 1
      %s113 = scalar_select %p110, %s111, %s112
      %p116 = pneg %p110
      %p117 = scmp.eq.s32.totalorder %s23, 1
      %p118 = por %p116, %p117
      %p119 = scmp.ne.s32.totalorder %s111, %s114
      %p120 = scmp.eq.s32.totalorder %s23, 0
      %p121 = por %p119, %p120
      %p122 = scmp.ne.s32.totalorder %s111, %s114
      %p123 = scmp.eq.s32.totalorder %s28, 1
      %p124 = por %p122, %p123
      %p125 = scmp.ne.s32.totalorder %s114, %s115
      %p126 = scmp.eq.s32.totalorder %s28, 0
      %p127 = por %p125, %p126
      %p128 = scmp.ne.s32.totalorder %s114, %s115
      %p129 = scmp.eq.s32.totalorder %s29, 1
      %p130 = por %p128, %p129
      %p132 = scmp.ne.s32.totalorder %s115, %s131
      %p133 = scmp.eq.s32.totalorder %s29, 0
      %p134 = por %p132, %p133
      %s135 = ssub.s32 %s23, %s30
      %p136 = scmp.eq.s32.totalorder %s135, 0
      %s138 = sadd.s32 %s137, 1
      %s139 = scalar_select %p136, %s137, %s138
      %p142 = pneg %p136
      %p143 = scmp.eq.s32.totalorder %s23, 1
      %p144 = por %p142, %p143
      %p145 = scmp.ne.s32.totalorder %s137, %s140
      %p146 = scmp.eq.s32.totalorder %s23, 0
      %p147 = por %p145, %p146
      %p148 = scmp.ne.s32.totalorder %s137, %s140
      %p149 = scmp.eq.s32.totalorder %s28, 1
      %p150 = por %p148, %p149
      %p151 = scmp.ne.s32.totalorder %s140, %s141
      %p152 = scmp.eq.s32.totalorder %s28, 0
      %p153 = por %p151, %p152
      %p154 = scmp.ne.s32.totalorder %s140, %s141
      %p155 = scmp.eq.s32.totalorder %s29, 1
      %p156 = por %p154, %p155
      %p158 = scmp.ne.s32.totalorder %s141, %s157
      %p159 = scmp.eq.s32.totalorder %s29, 0
      %p160 = por %p158, %p159
      %s161 = ssub.s32 %s23, %s30
      %p162 = scmp.eq.s32.totalorder %s161, 0
      %s164 = sadd.s32 %s163, 1
      %s165 = scalar_select %p162, %s163, %s164
      %p168 = pneg %p162
      %p169 = scmp.eq.s32.totalorder %s23, 1
      %p170 = por %p168, %p169
      %p171 = scmp.ne.s32.totalorder %s163, %s166
      %p172 = scmp.eq.s32.totalorder %s23, 0
      %p173 = por %p171, %p172
      %p174 = scmp.ne.s32.totalorder %s163, %s166
      %p175 = scmp.eq.s32.totalorder %s28, 1
      %p176 = por %p174, %p175
      %p177 = scmp.ne.s32.totalorder %s166, %s167
      %p178 = scmp.eq.s32.totalorder %s28, 0
      %p179 = por %p177, %p178
      %p180 = scmp.ne.s32.totalorder %s166, %s167
      %p181 = scmp.eq.s32.totalorder %s29, 1
      %p182 = por %p180, %p181
      %p184 = scmp.ne.s32.totalorder %s167, %s183
      %p185 = scmp.eq.s32.totalorder %s29, 0
      %p186 = por %p184, %p185
      %p187 = scmp.le.s32.totalorder 1, %s23
      %p188 = scmp.lt.s32.totalorder %s23, 3
      %p189 = pnand %p187, %p188
      %p190 = pneg %p189
      // Predicated region
      $region9: #{tpu_custom_call.1} parent=5 // pred_check
        _
      $region10: #{tpu_custom_call.1} parent=5 // pred_check_branch
        %192 = sbr.rel (%p189) target = $region12
      $region11: #{tpu_custom_call.1} parent=5 // pred_region
        %s193 = ssub.s32 %s23, 1
      $region12: #{tpu_custom_call.1} parent=5 // pred_fallthru
        _
      %p194 = scmp.lt.s32.totalorder %s23, 2
      // Predicated region
      $region13: #{tpu_custom_call.1} parent=5 // pred_check
        %p195 = pneg %p194
      $region14: #{tpu_custom_call.1} parent=5 // pred_check_branch
        %197 = sbr.rel (%p195) target = $region16
      $region15: #{tpu_custom_call.1} parent=5 // pred_region
        // Predicated region
        $region17: #{tpu_custom_call.1} parent=15 // pred_check
          %p198 = pneg %p43
        $region18: #{tpu_custom_call.1} parent=15 // pred_check_branch
          %200 = sbr.rel (%p198) target = $region20
        $region19: #{tpu_custom_call.1} parent=15 // pred_region
          %s201 = sand.u32 %s33, 1
          %s202 = scalar_lea.sflag [#allocation3], %s201
          %s203 = sand.u32 %s33, 1
          %s204 = smul.addr %s203, 32
          %s205 = scalar_lea.vmem [#allocation2], %s204
          %s206 = smul.u32 4, %s23
          %s208 = ssub.s32 512, 512
          %209 = vsyncadd %s202, %s208
          %s210 = smul.addr %s206, 128
          %s211 = scalar_lea.hbm %s0, %s210
          %s212 = sshll.u32 %s205, 4
          %s213 = int_to_ptr.vmem [resolvable:$true] %s212
          %218 = dma.hbm_to_vmem [thread:$0]  %s211, 512, %s213, %s202, 128, 128, 8
        $region20: #{tpu_custom_call.1} parent=15 // pred_fallthru
          _
        // Predicated region
        $region21: #{tpu_custom_call.1} parent=15 // pred_check
          %p219 = pneg %p69
        $region22: #{tpu_custom_call.1} parent=15 // pred_check_branch
          %221 = sbr.rel (%p219) target = $region24
        $region23: #{tpu_custom_call.1} parent=15 // pred_region
          %s222 = sand.u32 %s23, 1
          %s223 = scalar_lea.sflag [#allocation6], %s222
          %s224 = sand.u32 %s59, 1
          %s225 = smul.addr %s224, 1024
          %s226 = scalar_lea.vmem [#allocation5], %s225
          %s227 = smul.u32 4, %s23
          %s229 = ssub.s32 16384, 16384
          %230 = vsyncadd %s223, %s229
          %s231 = smul.addr %s227, 32
          %s232 = smul.addr %s231, 128
          %s233 = scalar_lea.hbm %s1, %s232
          %s234 = sshll.u32 %s226, 4
          %s235 = int_to_ptr.vmem [resolvable:$true] %s234
          %240 = dma.hbm_to_vmem [thread:$0]  %s233, 16384, %s235, %s223, 256, 256, 16
        $region24: #{tpu_custom_call.1} parent=15 // pred_fallthru
          _
        // Predicated region
        $region25: #{tpu_custom_call.1} parent=15 // pred_check
          %p241 = pneg %p95
        $region26: #{tpu_custom_call.1} parent=15 // pred_check_branch
          %243 = sbr.rel (%p241) target = $region28
        $region27: #{tpu_custom_call.1} parent=15 // pred_region
          %s244 = sand.u32 %s23, 1
          %s245 = scalar_lea.sflag [#allocation6], %s244
          %s246 = sand.u32 %s85, 1
          %s247 = smul.addr %s246, 8
          %s248 = scalar_lea.vmem [#allocation7], %s247
          %s249 = smul.u32 4, %s23
          %s251 = ssub.s32 128, 128
          %252 = vsyncadd %s245, %s251
          %s253 = smul.addr %s249, 2
          %s254 = smul.addr %s253, 16
          %s255 = scalar_lea.hbm %s2, %s254
          %s256 = sshll.u32 %s248, 4
          %s257 = int_to_ptr.vmem [resolvable:$true] %s256
          %262 = dma.hbm_to_vmem [thread:$0]  %s255, 128, %s257, %s245, 32, 32, 2
        $region28: #{tpu_custom_call.1} parent=15 // pred_fallthru
          _
        // Predicated region
        $region29: #{tpu_custom_call.1} parent=15 // pred_check
          %p263 = pneg %p121
        $region30: #{tpu_custom_call.1} parent=15 // pred_check_branch
          %265 = sbr.rel (%p263) target = $region32
        $region31: #{tpu_custom_call.1} parent=15 // pred_region
          %s266 = sand.u32 %s111, 1
          %s267 = scalar_lea.sflag [#allocation9], %s266
          %s268 = sand.u32 %s111, 1
          %s269 = smul.addr %s268, 1024
          %s270 = scalar_lea.vmem [#allocation8], %s269
          %s271 = smul.u32 4, %s23
          %s273 = ssub.s32 16384, 16384
          %274 = vsyncadd %s267, %s273
          %s275 = smul.addr %s271, 32
          %s276 = smul.addr %s275, 128
          %s277 = scalar_lea.hbm %s3, %s276
          %s278 = sshll.u32 %s270, 4
          %s279 = int_to_ptr.vmem [resolvable:$true] %s278
          %284 = dma.hbm_to_vmem [thread:$0]  %s277, 16384, %s279, %s267, 128, 128, 8
        $region32: #{tpu_custom_call.1} parent=15 // pred_fallthru
          _
        // Predicated region
        $region33: #{tpu_custom_call.1} parent=15 // pred_check
          %p285 = pneg %p147
        $region34: #{tpu_custom_call.1} parent=15 // pred_check_branch
          %287 = sbr.rel (%p285) target = $region36
        $region35: #{tpu_custom_call.1} parent=15 // pred_region
          %s288 = smul.u32 4, %s23
          %p289 = scmp.lt.s32.totalorder %s288, 7
          %s290 = scalar_select %p289, %s288, 7
          %s291 = scalar_lea.vmem %s4, %s290
          %s292 = smul.u32 4, %s23
        $region36: #{tpu_custom_call.1} parent=15 // pred_fallthru
          _
      $region16: #{tpu_custom_call.1} parent=5 // pred_fallthru
        _
      %p293 = scmp.le.s32.totalorder 1, %s23
      %p294 = scmp.lt.s32.totalorder %s23, 3
      %p295 = pnand %p293, %p294
      %p296 = pneg %p295
      // Predicated region
      $region37: #{tpu_custom_call.1} parent=5 // pred_check
        _
      $region38: #{tpu_custom_call.1} parent=5 // pred_check_branch
        %298 = sbr.rel (%p295) target = $region40
      $region39: #{tpu_custom_call.1} parent=5 // pred_region
        %s299 = ssub.s32 %s23, 1
        %s300 = sand.u32 %s36, 1
        %s301 = scalar_lea.sflag [#allocation3], %s300
        %s302 = sand.u32 %s36, 1
        %s303 = smul.addr %s302, 32
        %s304 = scalar_lea.vmem [#allocation2], %s303
        // Predicated region
        $region41: #{tpu_custom_call.1} parent=39 // pred_check
          %p305 = pneg %p49
        $region42: #{tpu_custom_call.1} parent=39 // pred_check_branch
          %307 = sbr.rel (%p305) target = $region44
        $region43: #{tpu_custom_call.1} parent=39 // pred_region
          %308 = dma.done %s301, 512
        $region44: #{tpu_custom_call.1} parent=39 // pred_fallthru
          _
        %s309 = sand.u32 %s28, 1
        %s310 = scalar_lea.sflag [#allocation6], %s309
        %s311 = sand.u32 %s62, 1
        %s312 = smul.addr %s311, 1024
        %s313 = scalar_lea.vmem [#allocation5], %s312
        // Predicated region
        $region45: #{tpu_custom_call.1} parent=39 // pred_check
          %p314 = pneg %p75
        $region46: #{tpu_custom_call.1} parent=39 // pred_check_branch
          %316 = sbr.rel (%p314) target = $region48
        $region47: #{tpu_custom_call.1} parent=39 // pred_region
          %317 = dma.done %s310, 16384
        $region48: #{tpu_custom_call.1} parent=39 // pred_fallthru
          _
        %s318 = sand.u32 %s28, 1
        %s319 = scalar_lea.sflag [#allocation6], %s318
        %s320 = sand.u32 %s88, 1
        %s321 = smul.addr %s320, 8
        %s322 = scalar_lea.vmem [#allocation7], %s321
        // Predicated region
        $region49: #{tpu_custom_call.1} parent=39 // pred_check
          %p323 = pneg %p101
        $region50: #{tpu_custom_call.1} parent=39 // pred_check_branch
          %325 = sbr.rel (%p323) target = $region52
        $region51: #{tpu_custom_call.1} parent=39 // pred_region
          %326 = dma.done %s319, 128
        $region52: #{tpu_custom_call.1} parent=39 // pred_fallthru
          _
        %s327 = sand.u32 %s114, 1
        %s328 = scalar_lea.sflag [#allocation9], %s327
        %s329 = sand.u32 %s114, 1
        %s330 = smul.addr %s329, 1024
        %s331 = scalar_lea.vmem [#allocation8], %s330
        // Predicated region
        $region53: #{tpu_custom_call.1} parent=39 // pred_check
          %p332 = pneg %p127
        $region54: #{tpu_custom_call.1} parent=39 // pred_check_branch
          %334 = sbr.rel (%p332) target = $region56
        $region55: #{tpu_custom_call.1} parent=39 // pred_region
          %335 = dma.done %s328, 16384
        $region56: #{tpu_custom_call.1} parent=39 // pred_fallthru
          _
        %s336 = sand.u32 %s36, 1
        %s337 = scalar_lea.sflag [#allocation3], %s336
        %s338 = sand.u32 %s36, 1
        %s339 = smul.addr %s338, 32
        %s340 = scalar_lea.vmem [#allocation2], %s339
        %p341 = pneg %p49
        %p342 = pneg %p46
        %s343 = sand.u32 %s28, 1
        %s344 = scalar_lea.sflag [#allocation6], %s343
        %s345 = sand.u32 %s62, 1
        %s346 = smul.addr %s345, 1024
        %s347 = scalar_lea.vmem [#allocation5], %s346
        %p348 = pneg %p75
        %p349 = pneg %p72
        %s350 = sand.u32 %s28, 1
        %s351 = scalar_lea.sflag [#allocation6], %s350
        %s352 = sand.u32 %s88, 1
        %s353 = smul.addr %s352, 8
        %s354 = scalar_lea.vmem [#allocation7], %s353
        %p355 = pneg %p101
        %p356 = pneg %p98
        %s357 = sand.u32 %s114, 1
        %s358 = scalar_lea.sflag [#allocation9], %s357
        %s359 = sand.u32 %s114, 1
        %s360 = smul.addr %s359, 1024
        %s361 = scalar_lea.vmem [#allocation8], %s360
        %p362 = pneg %p127
        %p363 = pneg %p124
        %s364 = smul.u32 4, %s28
        %p365 = scmp.lt.s32.totalorder %s364, 7
        %s366 = scalar_select %p365, %s364, 7
        %s367 = scalar_lea.vmem %s4, %s366
        %p368 = pneg %p153
        %p369 = pneg %p150
        %p370 = pneg %p179
        %p371 = pneg %p176
        %s372 = sand.u32 %s166, 1
        %s373 = scalar_lea.sflag [#allocation4], %s372
        %s374 = sand.u32 %s166, 1
        %s375 = smul.addr %s374, 32
        %s376 = scalar_lea.vmem [#allocation10], %s375
        %s377 = smul.u32 4, %s28
        %s378 = smul.u32 4, %s28
        %s379 = smul.u32 4, %s28
        %s380 = smul.u32 4, %s28
        %s381 = smul.u32 4, %s28
        %p382 = scmp.lt.s32.totalorder %s381, 7
        %s383 = scalar_select %p382, %s381, 7
        %s384 = scalar_lea.vmem %s4, %s383
        %s385 = smul.u32 4, %s28
        %s386 = smul.u32 4, %s28
        %v387 = vld [vmem:[%s304] sm:$0xff]
        %v388 = vld [vmem:[%s313] sm:$0xff]
        %v389 = vld [vmem:[%s313 + $0x8] sm:$0xff]
        %v390 = vld [vmem:[%s313 + $0x10] sm:$0xff]
        %v391 = vld [vmem:[%s313 + $0x18] sm:$0xff]
        %v392 = vld [vmem:[%s313 + $0x20] sm:$0xff]
        %v393 = vld [vmem:[%s313 + $0x28] sm:$0xff]
        %v394 = vld [vmem:[%s313 + $0x30] sm:$0xff]
        %v395 = vld [vmem:[%s313 + $0x38] sm:$0xff]
        %v396 = vld [vmem:[%s313 + $0x40] sm:$0xff]
        %v397 = vld [vmem:[%s313 + $0x48] sm:$0xff]
        %v398 = vld [vmem:[%s313 + $0x50] sm:$0xff]
        %v399 = vld [vmem:[%s313 + $0x58] sm:$0xff]
        %v400 = vld [vmem:[%s313 + $0x60] sm:$0xff]
        %v401 = vld [vmem:[%s313 + $0x68] sm:$0xff]
        %v402 = vld [vmem:[%s313 + $0x70] sm:$0xff]
        %v403 = vld [vmem:[%s313 + $0x78] sm:$0xff]
        %v404 = vld [vmem:[%s313 + $0x80] sm:$0xff]
        %v405 = vld [vmem:[%s313 + $0x88] sm:$0xff]
        %v406 = vld [vmem:[%s313 + $0x90] sm:$0xff]
        %v407 = vld [vmem:[%s313 + $0x98] sm:$0xff]
        %v408 = vld [vmem:[%s313 + $0xa0] sm:$0xff]
        %v409 = vld [vmem:[%s313 + $0xa8] sm:$0xff]
        %v410 = vld [vmem:[%s313 + $0xb0] sm:$0xff]
        %v411 = vld [vmem:[%s313 + $0xb8] sm:$0xff]
        %v412 = vld [vmem:[%s313 + $0xc0] sm:$0xff]
        %v413 = vld [vmem:[%s313 + $0xc8] sm:$0xff]
        %v414 = vld [vmem:[%s313 + $0xd0] sm:$0xff]
        %v415 = vld [vmem:[%s313 + $0xd8] sm:$0xff]
        %v416 = vld [vmem:[%s313 + $0xe0] sm:$0xff]
        %v417 = vld [vmem:[%s313 + $0xe8] sm:$0xff]
        %v418 = vld [vmem:[%s313 + $0xf0] sm:$0xff]
        %v419 = vld [vmem:[%s313 + $0xf8] sm:$0xff]
        %v420 = vld [vmem:[%s322] sm:$0x3]
        %v422 = vlaneseq
        %v423 = vshrl.u32 %v422, 7
        %v424 = vsub.s32 0, %v423
        %v425 = vrot.slane %v420, %v424
        %v426 = vlaneseq
        %v427 = vshrl.u32 %v426, 7
        %v428 = vsub.s32 1, %v427
        %v429 = vrot.slane %v420, %v428
        %432 = vmatprep.subr.mxu0 %v389
        %433 = vmatpush1.msra.mxu0 %v388
        %434 = vmatprep.subr.mxu0 %v391
        %435 = vmatpush1.msra.mxu0 %v390
        %436 = vmatprep.subr.mxu0 %v393
        %437 = vmatpush1.msra.mxu0 %v392
        %438 = vmatprep.subr.mxu0 %v395
        %439 = vmatpush1.msra.mxu0 %v394
        %440 = vmatprep.subr.mxu0 %v397
        %441 = vmatpush1.msra.mxu0 %v396
        %442 = vmatprep.subr.mxu0 %v399
        %443 = vmatpush1.msra.mxu0 %v398
        %444 = vmatprep.subr.mxu0 %v401
        %445 = vmatpush1.msra.mxu0 %v400
        %446 = vmatprep.subr.mxu0 %v403
        %447 = vmatpush1.msra.mxu0 %v402
        %448 = vmatprep.subr.mxu0 %v405
        %449 = vmatpush1.msra.mxu0 %v404
        %450 = vmatprep.subr.mxu0 %v407
        %451 = vmatpush1.msra.mxu0 %v406
        %452 = vmatprep.subr.mxu0 %v409
        %453 = vmatpush1.msra.mxu0 %v408
        %454 = vmatprep.subr.mxu0 %v411
        %455 = vmatpush1.msra.mxu0 %v410
        %456 = vmatprep.subr.mxu0 %v413
        %457 = vmatpush1.msra.mxu0 %v412
        %458 = vmatprep.subr.mxu0 %v415
        %459 = vmatpush1.msra.mxu0 %v414
        %460 = vmatprep.subr.mxu0 %v417
        %461 = vmatpush1.msra.mxu0 %v416
        %462 = vmatprep.subr.mxu0 %v419
        %463 = vmatpush1.msra.mxu0 %v418
        %464 = vmatprep.subr.mxu0 0.0
        %465 = vmatpush1.msra.mxu0 0.0
        %466 = vmatprep.subr.mxu0 0.0
        %467 = vmatpush1.msra.mxu0 0.0
        %468 = vmatprep.subr.mxu0 0.0
        %469 = vmatpush1.msra.mxu0 0.0
        %470 = vmatprep.subr.mxu0 0.0
        %471 = vmatpush1.msra.mxu0 0.0
        %472 = vmatprep.subr.mxu0 0.0
        %473 = vmatpush1.msra.mxu0 0.0
        %474 = vmatprep.subr.mxu0 0.0
        %475 = vmatpush1.msra.mxu0 0.0
        %476 = vmatprep.subr.mxu0 0.0
        %477 = vmatpush1.msra.mxu0 0.0
        %478 = vmatprep.subr.mxu0 0.0
        %479 = vmatpush1.msra.mxu0 0.0
        %480 = vmatprep.subr.mxu0 0.0
        %481 = vmatpush1.msra.mxu0 0.0
        %482 = vmatprep.subr.mxu0 0.0
        %483 = vmatpush1.msra.mxu0 0.0
        %484 = vmatprep.subr.mxu0 0.0
        %485 = vmatpush1.msra.mxu0 0.0
        %486 = vmatprep.subr.mxu0 0.0
        %487 = vmatpush1.msra.mxu0 0.0
        %488 = vmatprep.subr.mxu0 0.0
        %489 = vmatpush1.msra.mxu0 0.0
        %490 = vmatprep.subr.mxu0 0.0
        %491 = vmatpush1.msra.mxu0 0.0
        %492 = vmatprep.subr.mxu0 0.0
        %493 = vmatpush1.msra.mxu0 0.0
        %494 = vmatprep.subr.mxu0 0.0
        %495 = vmatpush1.msra.mxu0 0.0
        %496 = vmatprep.mubr.f32.mxu0 0.0
        %497 = vmatmul.mubr.f32.gmra.mrb[0].mxu0 %v387
        %v498 = vpop.f32.mrb[0].mxu0
        %v499 = vadd.f32 %v425, %v498
        %v500 = vpop.f32.mrb[0].mxu0
        %v501 = vadd.f32 %v429, %v500
        %502 = vdwg.mxu0
        %v503 = vmax.f32 %v499, 0.0
        %v504 = vmax.f32 %v501, 0.0
        %v505 = vld [vmem:[%s331] sm:$0xff]
        %v506 = vld [vmem:[%s331 + $0x8] sm:$0xff]
        %v507 = vld [vmem:[%s331 + $0x10] sm:$0xff]
        %v508 = vld [vmem:[%s331 + $0x18] sm:$0xff]
        %v509 = vld [vmem:[%s331 + $0x20] sm:$0xff]
        %v510 = vld [vmem:[%s331 + $0x28] sm:$0xff]
        %v511 = vld [vmem:[%s331 + $0x30] sm:$0xff]
        %v512 = vld [vmem:[%s331 + $0x38] sm:$0xff]
        %v513 = vld [vmem:[%s331 + $0x40] sm:$0xff]
        %v514 = vld [vmem:[%s331 + $0x48] sm:$0xff]
        %v515 = vld [vmem:[%s331 + $0x50] sm:$0xff]
        %v516 = vld [vmem:[%s331 + $0x58] sm:$0xff]
        %v517 = vld [vmem:[%s331 + $0x60] sm:$0xff]
        %v518 = vld [vmem:[%s331 + $0x68] sm:$0xff]
        %v519 = vld [vmem:[%s331 + $0x70] sm:$0xff]
        %v520 = vld [vmem:[%s331 + $0x78] sm:$0xff]
        %v521 = vld [vmem:[%s331 + $0x80] sm:$0xff]
        %v522 = vld [vmem:[%s331 + $0x88] sm:$0xff]
        %v523 = vld [vmem:[%s331 + $0x90] sm:$0xff]
        %v524 = vld [vmem:[%s331 + $0x98] sm:$0xff]
        %v525 = vld [vmem:[%s331 + $0xa0] sm:$0xff]
        %v526 = vld [vmem:[%s331 + $0xa8] sm:$0xff]
        %v527 = vld [vmem:[%s331 + $0xb0] sm:$0xff]
        %v528 = vld [vmem:[%s331 + $0xb8] sm:$0xff]
        %v529 = vld [vmem:[%s331 + $0xc0] sm:$0xff]
        %v530 = vld [vmem:[%s331 + $0xc8] sm:$0xff]
        %v531 = vld [vmem:[%s331 + $0xd0] sm:$0xff]
        %v532 = vld [vmem:[%s331 + $0xd8] sm:$0xff]
        %v533 = vld [vmem:[%s331 + $0xe0] sm:$0xff]
        %v534 = vld [vmem:[%s331 + $0xe8] sm:$0xff]
        %v535 = vld [vmem:[%s331 + $0xf0] sm:$0xff]
        %v536 = vld [vmem:[%s331 + $0xf8] sm:$0xff]
        %v537 = vld [vmem:[%s384] sm:$0x1]
        %v539 = vlaneseq
        %v540 = vshrl.u32 %v539, 7
        %v541 = vsub.s32 0, %v540
        %v542 = vrot.slane %v537, %v541
        %544 = vmatprep.subr.mxu0 0.0
        %545 = vmatpush1.msra.mxu0 %v505
        %546 = vmatprep.subr.mxu0 0.0
        %547 = vmatpush1.msra.mxu0 %v506
        %548 = vmatprep.subr.mxu0 0.0
        %549 = vmatpush1.msra.mxu0 %v507
        %550 = vmatprep.subr.mxu0 0.0
        %551 = vmatpush1.msra.mxu0 %v508
        %552 = vmatprep.subr.mxu0 0.0
        %553 = vmatpush1.msra.mxu0 %v509
        %554 = vmatprep.subr.mxu0 0.0
        %555 = vmatpush1.msra.mxu0 %v510
        %556 = vmatprep.subr.mxu0 0.0
        %557 = vmatpush1.msra.mxu0 %v511
        %558 = vmatprep.subr.mxu0 0.0
        %559 = vmatpush1.msra.mxu0 %v512
        %560 = vmatprep.subr.mxu0 0.0
        %561 = vmatpush1.msra.mxu0 %v513
        %562 = vmatprep.subr.mxu0 0.0
        %563 = vmatpush1.msra.mxu0 %v514
        %564 = vmatprep.subr.mxu0 0.0
        %565 = vmatpush1.msra.mxu0 %v515
        %566 = vmatprep.subr.mxu0 0.0
        %567 = vmatpush1.msra.mxu0 %v516
        %568 = vmatprep.subr.mxu0 0.0
        %569 = vmatpush1.msra.mxu0 %v517
        %570 = vmatprep.subr.mxu0 0.0
        %571 = vmatpush1.msra.mxu0 %v518
        %572 = vmatprep.subr.mxu0 0.0
        %573 = vmatpush1.msra.mxu0 %v519
        %574 = vmatprep.subr.mxu0 0.0
        %575 = vmatpush1.msra.mxu0 %v520
        %576 = vmatprep.subr.mxu0 0.0
        %577 = vmatpush1.msra.mxu0 %v521
        %578 = vmatprep.subr.mxu0 0.0
        %579 = vmatpush1.msra.mxu0 %v522
        %580 = vmatprep.subr.mxu0 0.0
        %581 = vmatpush1.msra.mxu0 %v523
        %582 = vmatprep.subr.mxu0 0.0
        %583 = vmatpush1.msra.mxu0 %v524
        %584 = vmatprep.subr.mxu0 0.0
        %585 = vmatpush1.msra.mxu0 %v525
        %586 = vmatprep.subr.mxu0 0.0
        %587 = vmatpush1.msra.mxu0 %v526
        %588 = vmatprep.subr.mxu0 0.0
        %589 = vmatpush1.msra.mxu0 %v527
        %590 = vmatprep.subr.mxu0 0.0
        %591 = vmatpush1.msra.mxu0 %v528
        %592 = vmatprep.subr.mxu0 0.0
        %593 = vmatpush1.msra.mxu0 %v529
        %594 = vmatprep.subr.mxu0 0.0
        %595 = vmatpush1.msra.mxu0 %v530
        %596 = vmatprep.subr.mxu0 0.0
        %597 = vmatpush1.msra.mxu0 %v531
        %598 = vmatprep.subr.mxu0 0.0
        %599 = vmatpush1.msra.mxu0 %v532
        %600 = vmatprep.subr.mxu0 0.0
        %601 = vmatpush1.msra.mxu0 %v533
        %602 = vmatprep.subr.mxu0 0.0
        %603 = vmatpush1.msra.mxu0 %v534
        %604 = vmatprep.subr.mxu0 0.0
        %605 = vmatpush1.msra.mxu0 %v535
        %606 = vmatprep.subr.mxu0 0.0
        %607 = vmatpush1.msra.mxu0 %v536
        %608 = vmatprep.mubr.f32.mxu0 %v504
        %609 = vmatmul.mubr.f32.gmra.mrb[0].mxu0 %v503
        %v610 = vpop.f32.mrb[0].mxu0
        %v611 = vadd.f32 %v542, %v610
        %v612 = vpop.f32.mrb[0].mxu0
        %613 = vdwg.mxu0
        %614 = vst [vmem:[%s376] sm:$0xff] %v611
        %s615 = scalar_lea.vmem %s304, 8 [#allocation2]
        %v616 = vld [vmem:[%s615] sm:$0xff]
        %s617 = scalar_lea.vmem %s313, 256 [#allocation5]
        %v618 = vld [vmem:[%s617] sm:$0xff]
        %v619 = vld [vmem:[%s617 + $0x8] sm:$0xff]
        %v620 = vld [vmem:[%s617 + $0x10] sm:$0xff]
        %v621 = vld [vmem:[%s617 + $0x18] sm:$0xff]
        %v622 = vld [vmem:[%s617 + $0x20] sm:$0xff]
        %v623 = vld [vmem:[%s617 + $0x28] sm:$0xff]
        %v624 = vld [vmem:[%s617 + $0x30] sm:$0xff]
        %v625 = vld [vmem:[%s617 + $0x38] sm:$0xff]
        %v626 = vld [vmem:[%s617 + $0x40] sm:$0xff]
        %v627 = vld [vmem:[%s617 + $0x48] sm:$0xff]
        %v628 = vld [vmem:[%s617 + $0x50] sm:$0xff]
        %v629 = vld [vmem:[%s617 + $0x58] sm:$0xff]
        %v630 = vld [vmem:[%s617 + $0x60] sm:$0xff]
        %v631 = vld [vmem:[%s617 + $0x68] sm:$0xff]
        %v632 = vld [vmem:[%s617 + $0x70] sm:$0xff]
        %v633 = vld [vmem:[%s617 + $0x78] sm:$0xff]
        %v634 = vld [vmem:[%s617 + $0x80] sm:$0xff]
        %v635 = vld [vmem:[%s617 + $0x88] sm:$0xff]
        %v636 = vld [vmem:[%s617 + $0x90] sm:$0xff]
        %v637 = vld [vmem:[%s617 + $0x98] sm:$0xff]
        %v638 = vld [vmem:[%s617 + $0xa0] sm:$0xff]
        %v639 = vld [vmem:[%s617 + $0xa8] sm:$0xff]
        %v640 = vld [vmem:[%s617 + $0xb0] sm:$0xff]
        %v641 = vld [vmem:[%s617 + $0xb8] sm:$0xff]
        %v642 = vld [vmem:[%s617 + $0xc0] sm:$0xff]
        %v643 = vld [vmem:[%s617 + $0xc8] sm:$0xff]
        %v644 = vld [vmem:[%s617 + $0xd0] sm:$0xff]
        %v645 = vld [vmem:[%s617 + $0xd8] sm:$0xff]
        %v646 = vld [vmem:[%s617 + $0xe0] sm:$0xff]
        %v647 = vld [vmem:[%s617 + $0xe8] sm:$0xff]
        %v648 = vld [vmem:[%s617 + $0xf0] sm:$0xff]
        %v649 = vld [vmem:[%s617 + $0xf8] sm:$0xff]
        %s650 = scalar_lea.vmem %s322, 2 [#allocation7]
        %v651 = vld [vmem:[%s650] sm:$0x3]
        %v653 = vlaneseq
        %v654 = vshrl.u32 %v653, 7
        %v655 = vsub.s32 0, %v654
        %v656 = vrot.slane %v651, %v655
        %v657 = vlaneseq
        %v658 = vshrl.u32 %v657, 7
        %v659 = vsub.s32 1, %v658
        %v660 = vrot.slane %v651, %v659
        %663 = vmatprep.subr.mxu0 %v619
        %664 = vmatpush1.msra.mxu0 %v618
        %665 = vmatprep.subr.mxu0 %v621
        %666 = vmatpush1.msra.mxu0 %v620
        %667 = vmatprep.subr.mxu0 %v623
        %668 = vmatpush1.msra.mxu0 %v622
        %669 = vmatprep.subr.mxu0 %v625
        %670 = vmatpush1.msra.mxu0 %v624
        %671 = vmatprep.subr.mxu0 %v627
        %672 = vmatpush1.msra.mxu0 %v626
        %673 = vmatprep.subr.mxu0 %v629
        %674 = vmatpush1.msra.mxu0 %v628
        %675 = vmatprep.subr.mxu0 %v631
        %676 = vmatpush1.msra.mxu0 %v630
        %677 = vmatprep.subr.mxu0 %v633
        %678 = vmatpush1.msra.mxu0 %v632
        %679 = vmatprep.subr.mxu0 %v635
        %680 = vmatpush1.msra.mxu0 %v634
        %681 = vmatprep.subr.mxu0 %v637
        %682 = vmatpush1.msra.mxu0 %v636
        %683 = vmatprep.subr.mxu0 %v639
        %684 = vmatpush1.msra.mxu0 %v638
        %685 = vmatprep.subr.mxu0 %v641
        %686 = vmatpush1.msra.mxu0 %v640
        %687 = vmatprep.subr.mxu0 %v643
        %688 = vmatpush1.msra.mxu0 %v642
        %689 = vmatprep.subr.mxu0 %v645
        %690 = vmatpush1.msra.mxu0 %v644
        %691 = vmatprep.subr.mxu0 %v647
        %692 = vmatpush1.msra.mxu0 %v646
        %693 = vmatprep.subr.mxu0 %v649
        %694 = vmatpush1.msra.mxu0 %v648
        %695 = vmatprep.subr.mxu0 0.0
        %696 = vmatpush1.msra.mxu0 0.0
        %697 = vmatprep.subr.mxu0 0.0
        %698 = vmatpush1.msra.mxu0 0.0
        %699 = vmatprep.subr.mxu0 0.0
        %700 = vmatpush1.msra.mxu0 0.0
        %701 = vmatprep.subr.mxu0 0.0
        %702 = vmatpush1.msra.mxu0 0.0
        %703 = vmatprep.subr.mxu0 0.0
        %704 = vmatpush1.msra.mxu0 0.0
        %705 = vmatprep.subr.mxu0 0.0
        %706 = vmatpush1.msra.mxu0 0.0
        %707 = vmatprep.subr.mxu0 0.0
        %708 = vmatpush1.msra.mxu0 0.0
        %709 = vmatprep.subr.mxu0 0.0
        %710 = vmatpush1.msra.mxu0 0.0
        %711 = vmatprep.subr.mxu0 0.0
        %712 = vmatpush1.msra.mxu0 0.0
        %713 = vmatprep.subr.mxu0 0.0
        %714 = vmatpush1.msra.mxu0 0.0
        %715 = vmatprep.subr.mxu0 0.0
        %716 = vmatpush1.msra.mxu0 0.0
        %717 = vmatprep.subr.mxu0 0.0
        %718 = vmatpush1.msra.mxu0 0.0
        %719 = vmatprep.subr.mxu0 0.0
        %720 = vmatpush1.msra.mxu0 0.0
        %721 = vmatprep.subr.mxu0 0.0
        %722 = vmatpush1.msra.mxu0 0.0
        %723 = vmatprep.subr.mxu0 0.0
        %724 = vmatpush1.msra.mxu0 0.0
        %725 = vmatprep.subr.mxu0 0.0
        %726 = vmatpush1.msra.mxu0 0.0
        %727 = vmatprep.mubr.f32.mxu0 0.0
        %728 = vmatmul.mubr.f32.gmra.mrb[0].mxu0 %v616
        %v729 = vpop.f32.mrb[0].mxu0
        %v730 = vadd.f32 %v656, %v729
        %v731 = vpop.f32.mrb[0].mxu0
        %v732 = vadd.f32 %v660, %v731
        %733 = vdwg.mxu0
        %v734 = vmax.f32 %v730, 0.0
        %v735 = vmax.f32 %v732, 0.0
        %s736 = scalar_lea.vmem %s331, 256 [#allocation8]
        %v737 = vld [vmem:[%s736] sm:$0xff]
        %v738 = vld [vmem:[%s736 + $0x8] sm:$0xff]
        %v739 = vld [vmem:[%s736 + $0x10] sm:$0xff]
        %v740 = vld [vmem:[%s736 + $0x18] sm:$0xff]
        %v741 = vld [vmem:[%s736 + $0x20] sm:$0xff]
        %v742 = vld [vmem:[%s736 + $0x28] sm:$0xff]
        %v743 = vld [vmem:[%s736 + $0x30] sm:$0xff]
        %v744 = vld [vmem:[%s736 + $0x38] sm:$0xff]
        %v745 = vld [vmem:[%s736 + $0x40] sm:$0xff]
        %v746 = vld [vmem:[%s736 + $0x48] sm:$0xff]
        %v747 = vld [vmem:[%s736 + $0x50] sm:$0xff]
        %v748 = vld [vmem:[%s736 + $0x58] sm:$0xff]
        %v749 = vld [vmem:[%s736 + $0x60] sm:$0xff]
        %v750 = vld [vmem:[%s736 + $0x68] sm:$0xff]
        %v751 = vld [vmem:[%s736 + $0x70] sm:$0xff]
        %v752 = vld [vmem:[%s736 + $0x78] sm:$0xff]
        %v753 = vld [vmem:[%s736 + $0x80] sm:$0xff]
        %v754 = vld [vmem:[%s736 + $0x88] sm:$0xff]
        %v755 = vld [vmem:[%s736 + $0x90] sm:$0xff]
        %v756 = vld [vmem:[%s736 + $0x98] sm:$0xff]
        %v757 = vld [vmem:[%s736 + $0xa0] sm:$0xff]
        %v758 = vld [vmem:[%s736 + $0xa8] sm:$0xff]
        %v759 = vld [vmem:[%s736 + $0xb0] sm:$0xff]
        %v760 = vld [vmem:[%s736 + $0xb8] sm:$0xff]
        %v761 = vld [vmem:[%s736 + $0xc0] sm:$0xff]
        %v762 = vld [vmem:[%s736 + $0xc8] sm:$0xff]
        %v763 = vld [vmem:[%s736 + $0xd0] sm:$0xff]
        %v764 = vld [vmem:[%s736 + $0xd8] sm:$0xff]
        %v765 = vld [vmem:[%s736 + $0xe0] sm:$0xff]
        %v766 = vld [vmem:[%s736 + $0xe8] sm:$0xff]
        %v767 = vld [vmem:[%s736 + $0xf0] sm:$0xff]
        %v768 = vld [vmem:[%s736 + $0xf8] sm:$0xff]
        %s769 = scalar_lea.vmem %s384, 1
        %v770 = vld [vmem:[%s769] sm:$0x1]
        %v772 = vlaneseq
        %v773 = vshrl.u32 %v772, 7
        %v774 = vsub.s32 0, %v773
        %v775 = vrot.slane %v770, %v774
        %777 = vmatprep.subr.mxu0 0.0
        %778 = vmatpush1.msra.mxu0 %v737
        %779 = vmatprep.subr.mxu0 0.0
        %780 = vmatpush1.msra.mxu0 %v738
        %781 = vmatprep.subr.mxu0 0.0
        %782 = vmatpush1.msra.mxu0 %v739
        %783 = vmatprep.subr.mxu0 0.0
        %784 = vmatpush1.msra.mxu0 %v740
        %785 = vmatprep.subr.mxu0 0.0
        %786 = vmatpush1.msra.mxu0 %v741
        %787 = vmatprep.subr.mxu0 0.0
        %788 = vmatpush1.msra.mxu0 %v742
        %789 = vmatprep.subr.mxu0 0.0
        %790 = vmatpush1.msra.mxu0 %v743
        %791 = vmatprep.subr.mxu0 0.0
        %792 = vmatpush1.msra.mxu0 %v744
        %793 = vmatprep.subr.mxu0 0.0
        %794 = vmatpush1.msra.mxu0 %v745
        %795 = vmatprep.subr.mxu0 0.0
        %796 = vmatpush1.msra.mxu0 %v746
        %797 = vmatprep.subr.mxu0 0.0
        %798 = vmatpush1.msra.mxu0 %v747
        %799 = vmatprep.subr.mxu0 0.0
        %800 = vmatpush1.msra.mxu0 %v748
        %801 = vmatprep.subr.mxu0 0.0
        %802 = vmatpush1.msra.mxu0 %v749
        %803 = vmatprep.subr.mxu0 0.0
        %804 = vmatpush1.msra.mxu0 %v750
        %805 = vmatprep.subr.mxu0 0.0
        %806 = vmatpush1.msra.mxu0 %v751
        %807 = vmatprep.subr.mxu0 0.0
        %808 = vmatpush1.msra.mxu0 %v752
        %809 = vmatprep.subr.mxu0 0.0
        %810 = vmatpush1.msra.mxu0 %v753
        %811 = vmatprep.subr.mxu0 0.0
        %812 = vmatpush1.msra.mxu0 %v754
        %813 = vmatprep.subr.mxu0 0.0
        %814 = vmatpush1.msra.mxu0 %v755
        %815 = vmatprep.subr.mxu0 0.0
        %816 = vmatpush1.msra.mxu0 %v756
        %817 = vmatprep.subr.mxu0 0.0
        %818 = vmatpush1.msra.mxu0 %v757
        %819 = vmatprep.subr.mxu0 0.0
        %820 = vmatpush1.msra.mxu0 %v758
        %821 = vmatprep.subr.mxu0 0.0
        %822 = vmatpush1.msra.mxu0 %v759
        %823 = vmatprep.subr.mxu0 0.0
        %824 = vmatpush1.msra.mxu0 %v760
        %825 = vmatprep.subr.mxu0 0.0
        %826 = vmatpush1.msra.mxu0 %v761
        %827 = vmatprep.subr.mxu0 0.0
        %828 = vmatpush1.msra.mxu0 %v762
        %829 = vmatprep.subr.mxu0 0.0
        %830 = vmatpush1.msra.mxu0 %v763
        %831 = vmatprep.subr.mxu0 0.0
        %832 = vmatpush1.msra.mxu0 %v764
        %833 = vmatprep.subr.mxu0 0.0
        %834 = vmatpush1.msra.mxu0 %v765
        %835 = vmatprep.subr.mxu0 0.0
        %836 = vmatpush1.msra.mxu0 %v766
        %837 = vmatprep.subr.mxu0 0.0
        %838 = vmatpush1.msra.mxu0 %v767
        %839 = vmatprep.subr.mxu0 0.0
        %840 = vmatpush1.msra.mxu0 %v768
        %841 = vmatprep.mubr.f32.mxu0 %v735
        %842 = vmatmul.mubr.f32.gmra.mrb[0].mxu0 %v734
        %v843 = vpop.f32.mrb[0].mxu0
        %v844 = vadd.f32 %v775, %v843
        %v845 = vpop.f32.mrb[0].mxu0
        %846 = vdwg.mxu0
        %s847 = scalar_lea.vmem %s376, 8 [#allocation10]
        %848 = vst [vmem:[%s847] sm:$0xff] %v844
        %s849 = scalar_lea.vmem %s304, 16 [#allocation2]
        %v850 = vld [vmem:[%s849] sm:$0xff]
        %s851 = scalar_lea.vmem %s313, 512 [#allocation5]
        %v852 = vld [vmem:[%s851] sm:$0xff]
        %v853 = vld [vmem:[%s851 + $0x8] sm:$0xff]
        %v854 = vld [vmem:[%s851 + $0x10] sm:$0xff]
        %v855 = vld [vmem:[%s851 + $0x18] sm:$0xff]
        %v856 = vld [vmem:[%s851 + $0x20] sm:$0xff]
        %v857 = vld [vmem:[%s851 + $0x28] sm:$0xff]
        %v858 = vld [vmem:[%s851 + $0x30] sm:$0xff]
        %v859 = vld [vmem:[%s851 + $0x38] sm:$0xff]
        %v860 = vld [vmem:[%s851 + $0x40] sm:$0xff]
        %v861 = vld [vmem:[%s851 + $0x48] sm:$0xff]
        %v862 = vld [vmem:[%s851 + $0x50] sm:$0xff]
        %v863 = vld [vmem:[%s851 + $0x58] sm:$0xff]
        %v864 = vld [vmem:[%s851 + $0x60] sm:$0xff]
        %v865 = vld [vmem:[%s851 + $0x68] sm:$0xff]
        %v866 = vld [vmem:[%s851 + $0x70] sm:$0xff]
        %v867 = vld [vmem:[%s851 + $0x78] sm:$0xff]
        %v868 = vld [vmem:[%s851 + $0x80] sm:$0xff]
        %v869 = vld [vmem:[%s851 + $0x88] sm:$0xff]
        %v870 = vld [vmem:[%s851 + $0x90] sm:$0xff]
        %v871 = vld [vmem:[%s851 + $0x98] sm:$0xff]
        %v872 = vld [vmem:[%s851 + $0xa0] sm:$0xff]
        %v873 = vld [vmem:[%s851 + $0xa8] sm:$0xff]
        %v874 = vld [vmem:[%s851 + $0xb0] sm:$0xff]
        %v875 = vld [vmem:[%s851 + $0xb8] sm:$0xff]
        %v876 = vld [vmem:[%s851 + $0xc0] sm:$0xff]
        %v877 = vld [vmem:[%s851 + $0xc8] sm:$0xff]
        %v878 = vld [vmem:[%s851 + $0xd0] sm:$0xff]
        %v879 = vld [vmem:[%s851 + $0xd8] sm:$0xff]
        %v880 = vld [vmem:[%s851 + $0xe0] sm:$0xff]
        %v881 = vld [vmem:[%s851 + $0xe8] sm:$0xff]
        %v882 = vld [vmem:[%s851 + $0xf0] sm:$0xff]
        %v883 = vld [vmem:[%s851 + $0xf8] sm:$0xff]
        %s884 = scalar_lea.vmem %s322, 4 [#allocation7]
        %v885 = vld [vmem:[%s884] sm:$0x3]
        %v887 = vlaneseq
        %v888 = vshrl.u32 %v887, 7
        %v889 = vsub.s32 0, %v888
        %v890 = vrot.slane %v885, %v889
        %v891 = vlaneseq
        %v892 = vshrl.u32 %v891, 7
        %v893 = vsub.s32 1, %v892
        %v894 = vrot.slane %v885, %v893
        %897 = vmatprep.subr.mxu0 %v853
        %898 = vmatpush1.msra.mxu0 %v852
        %899 = vmatprep.subr.mxu0 %v855
        %900 = vmatpush1.msra.mxu0 %v854
        %901 = vmatprep.subr.mxu0 %v857
        %902 = vmatpush1.msra.mxu0 %v856
        %903 = vmatprep.subr.mxu0 %v859
        %904 = vmatpush1.msra.mxu0 %v858
        %905 = vmatprep.subr.mxu0 %v861
        %906 = vmatpush1.msra.mxu0 %v860
        %907 = vmatprep.subr.mxu0 %v863
        %908 = vmatpush1.msra.mxu0 %v862
        %909 = vmatprep.subr.mxu0 %v865
        %910 = vmatpush1.msra.mxu0 %v864
        %911 = vmatprep.subr.mxu0 %v867
        %912 = vmatpush1.msra.mxu0 %v866
        %913 = vmatprep.subr.mxu0 %v869
        %914 = vmatpush1.msra.mxu0 %v868
        %915 = vmatprep.subr.mxu0 %v871
        %916 = vmatpush1.msra.mxu0 %v870
        %917 = vmatprep.subr.mxu0 %v873
        %918 = vmatpush1.msra.mxu0 %v872
        %919 = vmatprep.subr.mxu0 %v875
        %920 = vmatpush1.msra.mxu0 %v874
        %921 = vmatprep.subr.mxu0 %v877
        %922 = vmatpush1.msra.mxu0 %v876
        %923 = vmatprep.subr.mxu0 %v879
        %924 = vmatpush1.msra.mxu0 %v878
        %925 = vmatprep.subr.mxu0 %v881
        %926 = vmatpush1.msra.mxu0 %v880
        %927 = vmatprep.subr.mxu0 %v883
        %928 = vmatpush1.msra.mxu0 %v882
        %929 = vmatprep.subr.mxu0 0.0
        %930 = vmatpush1.msra.mxu0 0.0
        %931 = vmatprep.subr.mxu0 0.0
        %932 = vmatpush1.msra.mxu0 0.0
        %933 = vmatprep.subr.mxu0 0.0
        %934 = vmatpush1.msra.mxu0 0.0
        %935 = vmatprep.subr.mxu0 0.0
        %936 = vmatpush1.msra.mxu0 0.0
        %937 = vmatprep.subr.mxu0 0.0
        %938 = vmatpush1.msra.mxu0 0.0
        %939 = vmatprep.subr.mxu0 0.0
        %940 = vmatpush1.msra.mxu0 0.0
        %941 = vmatprep.subr.mxu0 0.0
        %942 = vmatpush1.msra.mxu0 0.0
        %943 = vmatprep.subr.mxu0 0.0
        %944 = vmatpush1.msra.mxu0 0.0
        %945 = vmatprep.subr.mxu0 0.0
        %946 = vmatpush1.msra.mxu0 0.0
        %947 = vmatprep.subr.mxu0 0.0
        %948 = vmatpush1.msra.mxu0 0.0
        %949 = vmatprep.subr.mxu0 0.0
        %950 = vmatpush1.msra.mxu0 0.0
        %951 = vmatprep.subr.mxu0 0.0
        %952 = vmatpush1.msra.mxu0 0.0
        %953 = vmatprep.subr.mxu0 0.0
        %954 = vmatpush1.msra.mxu0 0.0
        %955 = vmatprep.subr.mxu0 0.0
        %956 = vmatpush1.msra.mxu0 0.0
        %957 = vmatprep.subr.mxu0 0.0
        %958 = vmatpush1.msra.mxu0 0.0
        %959 = vmatprep.subr.mxu0 0.0
        %960 = vmatpush1.msra.mxu0 0.0
        %961 = vmatprep.mubr.f32.mxu0 0.0
        %962 = vmatmul.mubr.f32.gmra.mrb[0].mxu0 %v850
        %v963 = vpop.f32.mrb[0].mxu0
        %v964 = vadd.f32 %v890, %v963
        %v965 = vpop.f32.mrb[0].mxu0
        %v966 = vadd.f32 %v894, %v965
        %967 = vdwg.mxu0
        %v968 = vmax.f32 %v964, 0.0
        %v969 = vmax.f32 %v966, 0.0
        %s970 = scalar_lea.vmem %s331, 512 [#allocation8]
        %v971 = vld [vmem:[%s970] sm:$0xff]
        %v972 = vld [vmem:[%s970 + $0x8] sm:$0xff]
        %v973 = vld [vmem:[%s970 + $0x10] sm:$0xff]
        %v974 = vld [vmem:[%s970 + $0x18] sm:$0xff]
        %v975 = vld [vmem:[%s970 + $0x20] sm:$0xff]
        %v976 = vld [vmem:[%s970 + $0x28] sm:$0xff]
        %v977 = vld [vmem:[%s970 + $0x30] sm:$0xff]
        %v978 = vld [vmem:[%s970 + $0x38] sm:$0xff]
        %v979 = vld [vmem:[%s970 + $0x40] sm:$0xff]
        %v980 = vld [vmem:[%s970 + $0x48] sm:$0xff]
        %v981 = vld [vmem:[%s970 + $0x50] sm:$0xff]
        %v982 = vld [vmem:[%s970 + $0x58] sm:$0xff]
        %v983 = vld [vmem:[%s970 + $0x60] sm:$0xff]
        %v984 = vld [vmem:[%s970 + $0x68] sm:$0xff]
        %v985 = vld [vmem:[%s970 + $0x70] sm:$0xff]
        %v986 = vld [vmem:[%s970 + $0x78] sm:$0xff]
        %v987 = vld [vmem:[%s970 + $0x80] sm:$0xff]
        %v988 = vld [vmem:[%s970 + $0x88] sm:$0xff]
        %v989 = vld [vmem:[%s970 + $0x90] sm:$0xff]
        %v990 = vld [vmem:[%s970 + $0x98] sm:$0xff]
        %v991 = vld [vmem:[%s970 + $0xa0] sm:$0xff]
        %v992 = vld [vmem:[%s970 + $0xa8] sm:$0xff]
        %v993 = vld [vmem:[%s970 + $0xb0] sm:$0xff]
        %v994 = vld [vmem:[%s970 + $0xb8] sm:$0xff]
        %v995 = vld [vmem:[%s970 + $0xc0] sm:$0xff]
        %v996 = vld [vmem:[%s970 + $0xc8] sm:$0xff]
        %v997 = vld [vmem:[%s970 + $0xd0] sm:$0xff]
        %v998 = vld [vmem:[%s970 + $0xd8] sm:$0xff]
        %v999 = vld [vmem:[%s970 + $0xe0] sm:$0xff]
        %v1000 = vld [vmem:[%s970 + $0xe8] sm:$0xff]
        %v1001 = vld [vmem:[%s970 + $0xf0] sm:$0xff]
        %v1002 = vld [vmem:[%s970 + $0xf8] sm:$0xff]
        %s1003 = scalar_lea.vmem %s384, 2
        %v1004 = vld [vmem:[%s1003] sm:$0x1]
        %v1006 = vlaneseq
        %v1007 = vshrl.u32 %v1006, 7
        %v1008 = vsub.s32 0, %v1007
        %v1009 = vrot.slane %v1004, %v1008
        %1011 = vmatprep.subr.mxu0 0.0
        %1012 = vmatpush1.msra.mxu0 %v971
        %1013 = vmatprep.subr.mxu0 0.0
        %1014 = vmatpush1.msra.mxu0 %v972
        %1015 = vmatprep.subr.mxu0 0.0
        %1016 = vmatpush1.msra.mxu0 %v973
        %1017 = vmatprep.subr.mxu0 0.0
        %1018 = vmatpush1.msra.mxu0 %v974
        %1019 = vmatprep.subr.mxu0 0.0
        %1020 = vmatpush1.msra.mxu0 %v975
        %1021 = vmatprep.subr.mxu0 0.0
        %1022 = vmatpush1.msra.mxu0 %v976
        %1023 = vmatprep.subr.mxu0 0.0
        %1024 = vmatpush1.msra.mxu0 %v977
        %1025 = vmatprep.subr.mxu0 0.0
        %1026 = vmatpush1.msra.mxu0 %v978
        %1027 = vmatprep.subr.mxu0 0.0
        %1028 = vmatpush1.msra.mxu0 %v979
        %1029 = vmatprep.subr.mxu0 0.0
        %1030 = vmatpush1.msra.mxu0 %v980
        %1031 = vmatprep.subr.mxu0 0.0
        %1032 = vmatpush1.msra.mxu0 %v981
        %1033 = vmatprep.subr.mxu0 0.0
        %1034 = vmatpush1.msra.mxu0 %v982
        %1035 = vmatprep.subr.mxu0 0.0
        %1036 = vmatpush1.msra.mxu0 %v983
        %1037 = vmatprep.subr.mxu0 0.0
        %1038 = vmatpush1.msra.mxu0 %v984
        %1039 = vmatprep.subr.mxu0 0.0
        %1040 = vmatpush1.msra.mxu0 %v985
        %1041 = vmatprep.subr.mxu0 0.0
        %1042 = vmatpush1.msra.mxu0 %v986
        %1043 = vmatprep.subr.mxu0 0.0
        %1044 = vmatpush1.msra.mxu0 %v987
        %1045 = vmatprep.subr.mxu0 0.0
        %1046 = vmatpush1.msra.mxu0 %v988
        %1047 = vmatprep.subr.mxu0 0.0
        %1048 = vmatpush1.msra.mxu0 %v989
        %1049 = vmatprep.subr.mxu0 0.0
        %1050 = vmatpush1.msra.mxu0 %v990
        %1051 = vmatprep.subr.mxu0 0.0
        %1052 = vmatpush1.msra.mxu0 %v991
        %1053 = vmatprep.subr.mxu0 0.0
        %1054 = vmatpush1.msra.mxu0 %v992
        %1055 = vmatprep.subr.mxu0 0.0
        %1056 = vmatpush1.msra.mxu0 %v993
        %1057 = vmatprep.subr.mxu0 0.0
        %1058 = vmatpush1.msra.mxu0 %v994
        %1059 = vmatprep.subr.mxu0 0.0
        %1060 = vmatpush1.msra.mxu0 %v995
        %1061 = vmatprep.subr.mxu0 0.0
        %1062 = vmatpush1.msra.mxu0 %v996
        %1063 = vmatprep.subr.mxu0 0.0
        %1064 = vmatpush1.msra.mxu0 %v997
        %1065 = vmatprep.subr.mxu0 0.0
        %1066 = vmatpush1.msra.mxu0 %v998
        %1067 = vmatprep.subr.mxu0 0.0
        %1068 = vmatpush1.msra.mxu0 %v999
        %1069 = vmatprep.subr.mxu0 0.0
        %1070 = vmatpush1.msra.mxu0 %v1000
        %1071 = vmatprep.subr.mxu0 0.0
        %1072 = vmatpush1.msra.mxu0 %v1001
        %1073 = vmatprep.subr.mxu0 0.0
        %1074 = vmatpush1.msra.mxu0 %v1002
        %1075 = vmatprep.mubr.f32.mxu0 %v969
        %1076 = vmatmul.mubr.f32.gmra.mrb[0].mxu0 %v968
        %v1077 = vpop.f32.mrb[0].mxu0
        %v1078 = vadd.f32 %v1009, %v1077
        %v1079 = vpop.f32.mrb[0].mxu0
        %1080 = vdwg.mxu0
        %s1081 = scalar_lea.vmem %s376, 16 [#allocation10]
        %1082 = vst [vmem:[%s1081] sm:$0xff] %v1078
        %s1083 = scalar_lea.vmem %s304, 24 [#allocation2]
        %v1084 = vld [vmem:[%s1083] sm:$0xff]
        %s1085 = scalar_lea.vmem %s313, 768 [#allocation5]
        %v1086 = vld [vmem:[%s1085] sm:$0xff]
        %v1087 = vld [vmem:[%s1085 + $0x8] sm:$0xff]
        %v1088 = vld [vmem:[%s1085 + $0x10] sm:$0xff]
        %v1089 = vld [vmem:[%s1085 + $0x18] sm:$0xff]
        %v1090 = vld [vmem:[%s1085 + $0x20] sm:$0xff]
        %v1091 = vld [vmem:[%s1085 + $0x28] sm:$0xff]
        %v1092 = vld [vmem:[%s1085 + $0x30] sm:$0xff]
        %v1093 = vld [vmem:[%s1085 + $0x38] sm:$0xff]
        %v1094 = vld [vmem:[%s1085 + $0x40] sm:$0xff]
        %v1095 = vld [vmem:[%s1085 + $0x48] sm:$0xff]
        %v1096 = vld [vmem:[%s1085 + $0x50] sm:$0xff]
        %v1097 = vld [vmem:[%s1085 + $0x58] sm:$0xff]
        %v1098 = vld [vmem:[%s1085 + $0x60] sm:$0xff]
        %v1099 = vld [vmem:[%s1085 + $0x68] sm:$0xff]
        %v1100 = vld [vmem:[%s1085 + $0x70] sm:$0xff]
        %v1101 = vld [vmem:[%s1085 + $0x78] sm:$0xff]
        %v1102 = vld [vmem:[%s1085 + $0x80] sm:$0xff]
        %v1103 = vld [vmem:[%s1085 + $0x88] sm:$0xff]
        %v1104 = vld [vmem:[%s1085 + $0x90] sm:$0xff]
        %v1105 = vld [vmem:[%s1085 + $0x98] sm:$0xff]
        %v1106 = vld [vmem:[%s1085 + $0xa0] sm:$0xff]
        %v1107 = vld [vmem:[%s1085 + $0xa8] sm:$0xff]
        %v1108 = vld [vmem:[%s1085 + $0xb0] sm:$0xff]
        %v1109 = vld [vmem:[%s1085 + $0xb8] sm:$0xff]
        %v1110 = vld [vmem:[%s1085 + $0xc0] sm:$0xff]
        %v1111 = vld [vmem:[%s1085 + $0xc8] sm:$0xff]
        %v1112 = vld [vmem:[%s1085 + $0xd0] sm:$0xff]
        %v1113 = vld [vmem:[%s1085 + $0xd8] sm:$0xff]
        %v1114 = vld [vmem:[%s1085 + $0xe0] sm:$0xff]
        %v1115 = vld [vmem:[%s1085 + $0xe8] sm:$0xff]
        %v1116 = vld [vmem:[%s1085 + $0xf0] sm:$0xff]
        %v1117 = vld [vmem:[%s1085 + $0xf8] sm:$0xff]
        %s1118 = scalar_lea.vmem %s322, 6 [#allocation7]
        %v1119 = vld [vmem:[%s1118] sm:$0x3]
        %v1121 = vlaneseq
        %v1122 = vshrl.u32 %v1121, 7
        %v1123 = vsub.s32 0, %v1122
        %v1124 = vrot.slane %v1119, %v1123
        %v1125 = vlaneseq
        %v1126 = vshrl.u32 %v1125, 7
        %v1127 = vsub.s32 1, %v1126
        %v1128 = vrot.slane %v1119, %v1127
        %1131 = vmatprep.subr.mxu0 %v1087
        %1132 = vmatpush1.msra.mxu0 %v1086
        %1133 = vmatprep.subr.mxu0 %v1089
        %1134 = vmatpush1.msra.mxu0 %v1088
        %1135 = vmatprep.subr.mxu0 %v1091
        %1136 = vmatpush1.msra.mxu0 %v1090
        %1137 = vmatprep.subr.mxu0 %v1093
        %1138 = vmatpush1.msra.mxu0 %v1092
        %1139 = vmatprep.subr.mxu0 %v1095
        %1140 = vmatpush1.msra.mxu0 %v1094
        %1141 = vmatprep.subr.mxu0 %v1097
        %1142 = vmatpush1.msra.mxu0 %v1096
        %1143 = vmatprep.subr.mxu0 %v1099
        %1144 = vmatpush1.msra.mxu0 %v1098
        %1145 = vmatprep.subr.mxu0 %v1101
        %1146 = vmatpush1.msra.mxu0 %v1100
        %1147 = vmatprep.subr.mxu0 %v1103
        %1148 = vmatpush1.msra.mxu0 %v1102
        %1149 = vmatprep.subr.mxu0 %v1105
        %1150 = vmatpush1.msra.mxu0 %v1104
        %1151 = vmatprep.subr.mxu0 %v1107
        %1152 = vmatpush1.msra.mxu0 %v1106
        %1153 = vmatprep.subr.mxu0 %v1109
        %1154 = vmatpush1.msra.mxu0 %v1108
        %1155 = vmatprep.subr.mxu0 %v1111
        %1156 = vmatpush1.msra.mxu0 %v1110
        %1157 = vmatprep.subr.mxu0 %v1113
        %1158 = vmatpush1.msra.mxu0 %v1112
        %1159 = vmatprep.subr.mxu0 %v1115
        %1160 = vmatpush1.msra.mxu0 %v1114
        %1161 = vmatprep.subr.mxu0 %v1117
        %1162 = vmatpush1.msra.mxu0 %v1116
        %1163 = vmatprep.subr.mxu0 0.0
        %1164 = vmatpush1.msra.mxu0 0.0
        %1165 = vmatprep.subr.mxu0 0.0
        %1166 = vmatpush1.msra.mxu0 0.0
        %1167 = vmatprep.subr.mxu0 0.0
        %1168 = vmatpush1.msra.mxu0 0.0
        %1169 = vmatprep.subr.mxu0 0.0
        %1170 = vmatpush1.msra.mxu0 0.0
        %1171 = vmatprep.subr.mxu0 0.0
        %1172 = vmatpush1.msra.mxu0 0.0
        %1173 = vmatprep.subr.mxu0 0.0
        %1174 = vmatpush1.msra.mxu0 0.0
        %1175 = vmatprep.subr.mxu0 0.0
        %1176 = vmatpush1.msra.mxu0 0.0
        %1177 = vmatprep.subr.mxu0 0.0
        %1178 = vmatpush1.msra.mxu0 0.0
        %1179 = vmatprep.subr.mxu0 0.0
        %1180 = vmatpush1.msra.mxu0 0.0
        %1181 = vmatprep.subr.mxu0 0.0
        %1182 = vmatpush1.msra.mxu0 0.0
        %1183 = vmatprep.subr.mxu0 0.0
        %1184 = vmatpush1.msra.mxu0 0.0
        %1185 = vmatprep.subr.mxu0 0.0
        %1186 = vmatpush1.msra.mxu0 0.0
        %1187 = vmatprep.subr.mxu0 0.0
        %1188 = vmatpush1.msra.mxu0 0.0
        %1189 = vmatprep.subr.mxu0 0.0
        %1190 = vmatpush1.msra.mxu0 0.0
        %1191 = vmatprep.subr.mxu0 0.0
        %1192 = vmatpush1.msra.mxu0 0.0
        %1193 = vmatprep.subr.mxu0 0.0
        %1194 = vmatpush1.msra.mxu0 0.0
        %1195 = vmatprep.mubr.f32.mxu0 0.0
        %1196 = vmatmul.mubr.f32.gmra.mrb[0].mxu0 %v1084
        %v1197 = vpop.f32.mrb[0].mxu0
        %v1198 = vadd.f32 %v1124, %v1197
        %v1199 = vpop.f32.mrb[0].mxu0
        %v1200 = vadd.f32 %v1128, %v1199
        %1201 = vdwg.mxu0
        %v1202 = vmax.f32 %v1198, 0.0
        %v1203 = vmax.f32 %v1200, 0.0
        %s1204 = scalar_lea.vmem %s331, 768 [#allocation8]
        %v1205 = vld [vmem:[%s1204] sm:$0xff]
        %v1206 = vld [vmem:[%s1204 + $0x8] sm:$0xff]
        %v1207 = vld [vmem:[%s1204 + $0x10] sm:$0xff]
        %v1208 = vld [vmem:[%s1204 + $0x18] sm:$0xff]
        %v1209 = vld [vmem:[%s1204 + $0x20] sm:$0xff]
        %v1210 = vld [vmem:[%s1204 + $0x28] sm:$0xff]
        %v1211 = vld [vmem:[%s1204 + $0x30] sm:$0xff]
        %v1212 = vld [vmem:[%s1204 + $0x38] sm:$0xff]
        %v1213 = vld [vmem:[%s1204 + $0x40] sm:$0xff]
        %v1214 = vld [vmem:[%s1204 + $0x48] sm:$0xff]
        %v1215 = vld [vmem:[%s1204 + $0x50] sm:$0xff]
        %v1216 = vld [vmem:[%s1204 + $0x58] sm:$0xff]
        %v1217 = vld [vmem:[%s1204 + $0x60] sm:$0xff]
        %v1218 = vld [vmem:[%s1204 + $0x68] sm:$0xff]
        %v1219 = vld [vmem:[%s1204 + $0x70] sm:$0xff]
        %v1220 = vld [vmem:[%s1204 + $0x78] sm:$0xff]
        %v1221 = vld [vmem:[%s1204 + $0x80] sm:$0xff]
        %v1222 = vld [vmem:[%s1204 + $0x88] sm:$0xff]
        %v1223 = vld [vmem:[%s1204 + $0x90] sm:$0xff]
        %v1224 = vld [vmem:[%s1204 + $0x98] sm:$0xff]
        %v1225 = vld [vmem:[%s1204 + $0xa0] sm:$0xff]
        %v1226 = vld [vmem:[%s1204 + $0xa8] sm:$0xff]
        %v1227 = vld [vmem:[%s1204 + $0xb0] sm:$0xff]
        %v1228 = vld [vmem:[%s1204 + $0xb8] sm:$0xff]
        %v1229 = vld [vmem:[%s1204 + $0xc0] sm:$0xff]
        %v1230 = vld [vmem:[%s1204 + $0xc8] sm:$0xff]
        %v1231 = vld [vmem:[%s1204 + $0xd0] sm:$0xff]
        %v1232 = vld [vmem:[%s1204 + $0xd8] sm:$0xff]
        %v1233 = vld [vmem:[%s1204 + $0xe0] sm:$0xff]
        %v1234 = vld [vmem:[%s1204 + $0xe8] sm:$0xff]
        %v1235 = vld [vmem:[%s1204 + $0xf0] sm:$0xff]
        %v1236 = vld [vmem:[%s1204 + $0xf8] sm:$0xff]
        %s1237 = scalar_lea.vmem %s384, 3
        %v1238 = vld [vmem:[%s1237] sm:$0x1]
        %v1240 = vlaneseq
        %v1241 = vshrl.u32 %v1240, 7
        %v1242 = vsub.s32 0, %v1241
        %v1243 = vrot.slane %v1238, %v1242
        %1245 = vmatprep.subr.mxu0 0.0
        %1246 = vmatpush1.msra.mxu0 %v1205
        %1247 = vmatprep.subr.mxu0 0.0
        %1248 = vmatpush1.msra.mxu0 %v1206
        %1249 = vmatprep.subr.mxu0 0.0
        %1250 = vmatpush1.msra.mxu0 %v1207
        %1251 = vmatprep.subr.mxu0 0.0
        %1252 = vmatpush1.msra.mxu0 %v1208
        %1253 = vmatprep.subr.mxu0 0.0
        %1254 = vmatpush1.msra.mxu0 %v1209
        %1255 = vmatprep.subr.mxu0 0.0
        %1256 = vmatpush1.msra.mxu0 %v1210
        %1257 = vmatprep.subr.mxu0 0.0
        %1258 = vmatpush1.msra.mxu0 %v1211
        %1259 = vmatprep.subr.mxu0 0.0
        %1260 = vmatpush1.msra.mxu0 %v1212
        %1261 = vmatprep.subr.mxu0 0.0
        %1262 = vmatpush1.msra.mxu0 %v1213
        %1263 = vmatprep.subr.mxu0 0.0
        %1264 = vmatpush1.msra.mxu0 %v1214
        %1265 = vmatprep.subr.mxu0 0.0
        %1266 = vmatpush1.msra.mxu0 %v1215
        %1267 = vmatprep.subr.mxu0 0.0
        %1268 = vmatpush1.msra.mxu0 %v1216
        %1269 = vmatprep.subr.mxu0 0.0
        %1270 = vmatpush1.msra.mxu0 %v1217
        %1271 = vmatprep.subr.mxu0 0.0
        %1272 = vmatpush1.msra.mxu0 %v1218
        %1273 = vmatprep.subr.mxu0 0.0
        %1274 = vmatpush1.msra.mxu0 %v1219
        %1275 = vmatprep.subr.mxu0 0.0
        %1276 = vmatpush1.msra.mxu0 %v1220
        %1277 = vmatprep.subr.mxu0 0.0
        %1278 = vmatpush1.msra.mxu0 %v1221
        %1279 = vmatprep.subr.mxu0 0.0
        %1280 = vmatpush1.msra.mxu0 %v1222
        %1281 = vmatprep.subr.mxu0 0.0
        %1282 = vmatpush1.msra.mxu0 %v1223
        %1283 = vmatprep.subr.mxu0 0.0
        %1284 = vmatpush1.msra.mxu0 %v1224
        %1285 = vmatprep.subr.mxu0 0.0
        %1286 = vmatpush1.msra.mxu0 %v1225
        %1287 = vmatprep.subr.mxu0 0.0
        %1288 = vmatpush1.msra.mxu0 %v1226
        %1289 = vmatprep.subr.mxu0 0.0
        %1290 = vmatpush1.msra.mxu0 %v1227
        %1291 = vmatprep.subr.mxu0 0.0
        %1292 = vmatpush1.msra.mxu0 %v1228
        %1293 = vmatprep.subr.mxu0 0.0
        %1294 = vmatpush1.msra.mxu0 %v1229
        %1295 = vmatprep.subr.mxu0 0.0
        %1296 = vmatpush1.msra.mxu0 %v1230
        %1297 = vmatprep.subr.mxu0 0.0
        %1298 = vmatpush1.msra.mxu0 %v1231
        %1299 = vmatprep.subr.mxu0 0.0
        %1300 = vmatpush1.msra.mxu0 %v1232
        %1301 = vmatprep.subr.mxu0 0.0
        %1302 = vmatpush1.msra.mxu0 %v1233
        %1303 = vmatprep.subr.mxu0 0.0
        %1304 = vmatpush1.msra.mxu0 %v1234
        %1305 = vmatprep.subr.mxu0 0.0
        %1306 = vmatpush1.msra.mxu0 %v1235
        %1307 = vmatprep.subr.mxu0 0.0
        %1308 = vmatpush1.msra.mxu0 %v1236
        %1309 = vmatprep.mubr.f32.mxu0 %v1203
        %1310 = vmatmul.mubr.f32.gmra.mrb[0].mxu0 %v1202
        %v1311 = vpop.f32.mrb[0].mxu0
        %v1312 = vadd.f32 %v1243, %v1311
        %v1313 = vpop.f32.mrb[0].mxu0
        %1314 = vdwg.mxu0
        %s1315 = scalar_lea.vmem %s376, 24 [#allocation10]
        %1316 = vst [vmem:[%s1315] sm:$0xff] %v1312
        %s1317 = sand.u32 %s166, 1
        %s1318 = scalar_lea.sflag [#allocation4], %s1317
        %s1319 = sand.u32 %s166, 1
        %s1320 = smul.addr %s1319, 32
        %s1321 = scalar_lea.vmem [#allocation10], %s1320
        // Predicated region
        $region57: #{tpu_custom_call.1} parent=39 // pred_check
          %p1322 = pneg %p176
        $region58: #{tpu_custom_call.1} parent=39 // pred_check_branch
          %1324 = sbr.rel (%p1322) target = $region60
        $region59: #{tpu_custom_call.1} parent=39 // pred_region
          %s1325 = smul.u32 4, %s28
          %s1327 = ssub.s32 512, 512
          %1328 = vsyncadd %s1318, %s1327
          %s1329 = smul.addr %s1325, 128
          %s1330 = scalar_lea.hbm %s5, %s1329
          %s1331 = sshll.u32 %s1321, 4
          %s1332 = int_to_ptr.vmem [resolvable:$true] %s1331
          %1337 = dma.vmem_to_hbm [thread:$0]  %s1332, 512, %s1330, %s1318, 128, 128, 8
        $region60: #{tpu_custom_call.1} parent=39 // pred_fallthru
          _
      $region40: #{tpu_custom_call.1} parent=5 // pred_fallthru
        _
      %p1338 = scmp.le.s32.totalorder 2, %s23
      // Predicated region
      $region61: #{tpu_custom_call.1} parent=5 // pred_check
        %p1339 = pneg %p1338
      $region62: #{tpu_custom_call.1} parent=5 // pred_check_branch
        %1341 = sbr.rel (%p1339) target = $region64
      $region63: #{tpu_custom_call.1} parent=5 // pred_region
        %s1342 = ssub.s32 %s23, 2
        // Predicated region
        $region65: #{tpu_custom_call.1} parent=63 // pred_check
          %p1343 = pneg %p182
        $region66: #{tpu_custom_call.1} parent=63 // pred_check_branch
          %1345 = sbr.rel (%p1343) target = $region68
        $region67: #{tpu_custom_call.1} parent=63 // pred_region
          %s1346 = sand.u32 %s167, 1
          %s1347 = scalar_lea.sflag [#allocation4], %s1346
          %s1348 = sand.u32 %s167, 1
          %s1349 = smul.addr %s1348, 32
          %s1350 = scalar_lea.vmem [#allocation10], %s1349
          %1351 = dma.done %s1347, 512
        $region68: #{tpu_custom_call.1} parent=63 // pred_fallthru
          _
      $region64: #{tpu_custom_call.1} parent=5 // pred_fallthru
        _
    $region6: #{tpu_custom_call.1} parent=1 // loop_footer
      %s27 = sadd.s32 1, %s23
    $region7: #{tpu_custom_call.1} parent=1 // loop_footer_branch
      %22 = sbr.rel target = $region3
    $region8: #{tpu_custom_call.1} parent=1 // loop_exit
      _
    %1352 = vsyncpa [#allocation3], 1
    %s1353 = scalar_lea.sflag [#allocation3], 1
    %1354 = vsyncpa %s1353, 1
    %1355 = vsyncpa [#allocation6], 1
    %s1356 = scalar_lea.sflag [#allocation6], 1
    %1357 = vsyncpa %s1356, 1
    %1358 = vsyncpa [#allocation9], 1
    %s1359 = scalar_lea.sflag [#allocation9], 1
    %1360 = vsyncpa %s1359, 1
    %1361 = vsyncpa [#allocation4], 1
    %s1362 = scalar_lea.sflag [#allocation4], 1
    %1363 = vsyncpa %s1362, 1

</llo_original>
